<compile_context>
chip_gen: v7x
topology: tpu7x:2x2x1
jax: 0.10.0
libtpu: 0.0.40
codegen_flags: <defaults>
</compile_context>

<pallas_src>
import functools
import math

import jax
import jax.numpy as jnp
from jax.experimental import pallas as pl
from jax.experimental.pallas import tpu as pltpu


def mha_kernel(x_ref, wqkv_ref, bqkv_ref, wo_ref, bo_ref, o_ref, *,
               num_heads, head_dim, approx_reciprocal):
    """Fused MHA forward for ONE batch element (one grid step).

    x_ref    : (S, D_in)   MXU dtype (bf16 or f32)
    wqkv_ref : (D_in, 3E)  pre-transposed / column-permuted / Q-scaled (resident)
    bqkv_ref : (1, 3E)     f32, same permutation / scaling (resident)
    wo_ref   : (E, E)      pre-transposed output projection (resident)
    bo_ref   : (1, E)      f32 (resident)
    o_ref    : (S, E)
    """
    H, Dh = num_heads, head_dim
    E = H * Dh
    cdt = x_ref.dtype          # MXU operand dtype; accumulation is always f32

    x = x_ref[...]

    # ---- fused QKV projection: one MXU dot over the S rows of this batch ----
    qkv = jnp.dot(x, wqkv_ref[...],
                  preferred_element_type=jnp.float32) + bqkv_ref[...]  # (S,3E) f32
    qkv = qkv.astype(cdt)

    # ---- split heads: (S, 3E) -> (H, S, Dh) per part ----
    # head_dim << 128 lanes, so separating heads is an unavoidable lane
    # relayout; a stack of static slices is the Mosaic-safe way to express it.
    def split_heads(part):
        base = part * E
        return jnp.stack(
            [qkv[:, base + h * Dh: base + (h + 1) * Dh] for h in range(H)],
            axis=0)

    q = split_heads(0)   # 1/sqrt(Dh) already folded into W_q / b_q
    k = split_heads(1)
    v = split_heads(2)

    # ---- attention: head-batched einsums, softmax in f32 ----
    s = jnp.einsum('hqd,hkd->hqk', q, k,
                   preferred_element_type=jnp.float32)          # (H,S,S) f32
    s = s - jnp.max(s, axis=-1, keepdims=True)
    p = jnp.exp(s)
    l = jnp.sum(p, axis=-1, keepdims=True)                      # (H,S,1) f32
    out_h = jnp.einsum('hqk,hkd->hqd', p.astype(cdt), v,
                       preferred_element_type=jnp.float32)      # (H,S,Dh) f32
    # Normalize AFTER the PV matmul: S*Dh multiplies instead of S*S.
    if approx_reciprocal:
        out_h = out_h * pl.reciprocal(l, approx=True)           # EUP slot
    else:
        out_h = out_h / l                                       # exact path

    # ---- output projection: concat heads -> single K=E MXU matmul ----
    vals = jnp.concatenate([out_h[h] for h in range(H)], axis=-1)  # (S, E)
    o = jnp.dot(vals.astype(cdt), wo_ref[...],
                preferred_element_type=jnp.float32) + bo_ref[...]  # (S, E) f32
    o_ref[...] = o.astype(o_ref.dtype)


def _prepare_params(w_qkv, b_qkv, w_o, b_o, num_heads, mxu_dtype):
    """Host-side (XLA) weight re-packing so the kernel never transposes.

    Returns:
      wqkv_t : (D_in, 3E)  columns ordered (part, head, dim); Q block pre-scaled
      bqkv   : (1, 3E)     f32, same ordering / scaling
      wo_t   : (E, E)      wo_t[i, e] == w_o[e, i]  (rows in (head, dim) order)
      bo     : (1, E)      f32
    """
    three_e, d_in = w_qkv.shape
    E = three_e // 3
    H = num_heads
    Dh = E // H
    scale = 1.0 / math.sqrt(Dh)

    # nn.Linear row c of w_qkv corresponds to (head, part, dim) with
    # c = h*3*Dh + part*Dh + d  (matches the module's reshape + chunk).
    w = w_qkv.reshape(H, 3, Dh, d_in).transpose(1, 0, 2, 3)  # (part, h, d, D_in)
    w = w.at[0].multiply(scale)                              # fold scale into W_q
    wqkv_t = w.reshape(3 * E, d_in).T                        # (D_in, 3E)

    b = b_qkv.reshape(H, 3, Dh).transpose(1, 0, 2)
    b = b.at[0].multiply(scale)
    bqkv = b.reshape(1, 3 * E).astype(jnp.float32)

    wo_t = w_o.T                                             # (E, E)
    bo = b_o.reshape(1, E).astype(jnp.float32)

    if mxu_dtype is not None:
        wqkv_t = wqkv_t.astype(mxu_dtype)
        wo_t = wo_t.astype(mxu_dtype)
    return wqkv_t, bqkv, wo_t, bo


def multihead_attention(x, w_qkv, b_qkv, w_o, b_o, *, num_heads,
                        mxu_dtype=jnp.bfloat16, approx_reciprocal=True,
                        vmem_limit_bytes=64 * 1024 * 1024):
    """x: (B, S, D_in) -> (B, S, E).  Matches the PyTorch module's forward."""
    B, S, D_in = x.shape
    E = w_o.shape[0]
    Dh = E // num_heads
    assert S % 8 == 0, "seq_len must be a multiple of 8 (sublane tiling)"

    wqkv_t, bqkv, wo_t, bo = _prepare_params(w_qkv, b_qkv, w_o, b_o,
                                             num_heads, mxu_dtype)
    x2 = x.reshape(B * S, D_in)
    if mxu_dtype is not None:
        x2 = x2.astype(mxu_dtype)

    kernel = functools.partial(mha_kernel, num_heads=num_heads, head_dim=Dh,
                               approx_reciprocal=approx_reciprocal)

    flops = int(2 * B * S * D_in * 3 * E          # QKV projection
                + 4 * B * num_heads * S * S * Dh  # QK^T + PV
                + 2 * B * S * E * E)              # output projection
    transcendentals = int(B * num_heads * S * S)  # exp
    out_itemsize = jnp.dtype(x.dtype).itemsize
    bytes_accessed = int(x2.size * x2.dtype.itemsize
                         + wqkv_t.size * wqkv_t.dtype.itemsize
                         + wo_t.size * wo_t.dtype.itemsize
                         + bqkv.size * 4 + bo.size * 4
                         + B * S * E * out_itemsize)

    out = pl.pallas_call(
        kernel,
        out_shape=jax.ShapeDtypeStruct((B * S, E), x.dtype),
        grid_spec=pltpu.PrefetchScalarGridSpec(
            num_scalar_prefetch=0,
            grid=(B,),
            in_specs=[
                # streamed activation tile: one sequence per grid step
                pl.BlockSpec((S, D_in), lambda b: (b, 0)),
                # weights / biases: constant index_map -> VMEM-resident
                pl.BlockSpec((D_in, 3 * E), lambda b: (0, 0)),
                pl.BlockSpec((1, 3 * E), lambda b: (0, 0)),
                pl.BlockSpec((E, E), lambda b: (0, 0)),
                pl.BlockSpec((1, E), lambda b: (0, 0)),
            ],
            out_specs=pl.BlockSpec((S, E), lambda b: (b, 0)),
        ),
        compiler_params=pltpu.CompilerParams(
            dimension_semantics=("parallel",),
            vmem_limit_bytes=vmem_limit_bytes),
        cost_estimate=pl.CostEstimate(flops=flops,
                                      transcendentals=transcendentals,
                                      bytes_accessed=bytes_accessed),
    )(x2, wqkv_t, bqkv, wo_t, bo)
    return out.reshape(B, S, E)


def _reference(x, w_qkv, b_qkv, w_o, b_o, num_heads):
    """Pure-JAX reference mirroring the PyTorch forward."""
    B, S, _ = x.shape
    E = w_o.shape[0]
    Dh = E // num_heads
    qkv = jnp.einsum('bsd,ed->bse', x, w_qkv) + b_qkv
    qkv = qkv.reshape(B, S, num_heads, 3 * Dh).transpose(0, 2, 1, 3)
    q, k, v = jnp.split(qkv, 3, axis=-1)
    logits = jnp.einsum('bhqd,bhkd->bhqk', q, k) / math.sqrt(Dh)
    attn = jax.nn.softmax(logits, axis=-1)
    vals = jnp.einsum('bhqk,bhkd->bhqd', attn, v)
    vals = vals.transpose(0, 2, 1, 3).reshape(B, S, E)
    return jnp.einsum('bse,fe->bsf', vals, w_o) + b_o


def _xavier_uniform(key, shape):
    fan_out, fan_in = shape
    bound = math.sqrt(6.0 / (fan_in + fan_out))
    return jax.random.uniform(key, shape, jnp.float32, -bound, bound)


def _run_case(key, B, S, input_dim, embed_dim, num_heads):
    kx, kw1, kw2, kb1, kb2 = jax.random.split(key, 5)
    x = jax.random.normal(kx, (B, S, input_dim), dtype=jnp.float32)
    w_qkv = _xavier_uniform(kw1, (3 * embed_dim, input_dim))
    b_qkv = 0.1 * jax.random.normal(kb1, (3 * embed_dim,), jnp.float32)
    w_o = _xavier_uniform(kw2, (embed_dim, embed_dim))
    b_o = 0.1 * jax.random.normal(kb2, (embed_dim,), jnp.float32)

    ref = _reference(x, w_qkv, b_qkv, w_o, b_o, num_heads)

    # Strict-numerics path: f32 operands, exact softmax division.
    out_f32 = jax.block_until_ready(
        multihead_attention(x, w_qkv, b_qkv, w_o, b_o, num_heads=num_heads,
                            mxu_dtype=None, approx_reciprocal=False))
    assert out_f32.shape == (B, S, embed_dim)
    assert jnp.allclose(out_f32, ref, atol=2e-2, rtol=2e-2), "f32 kernel mismatch"

    # Default path: bf16 MXU operands, f32 accumulation / f32 softmax.
    out_bf16 = jax.block_until_ready(
        multihead_attention(x, w_qkv, b_qkv, w_o, b_o, num_heads=num_heads))
    assert out_bf16.shape == (B, S, embed_dim)
    assert jnp.allclose(out_bf16, ref, atol=8e-2, rtol=8e-2), "bf16 kernel mismatch"


if __name__ == "__main__":
    root = jax.random.PRNGKey(0)
    k1, k2 = jax.random.split(root)

    # Primary config: embed_dim = 128 so the output store is lane-dense.
    _run_case(k1, B=2, S=8, input_dim=64, embed_dim=128, num_heads=4)

    # Small-E config (matches the original toy module shapes); exercises the
    # sub-128-lane (masked-store) output path for generality.
    _run_case(k2, B=2, S=8, input_dim=16, embed_dim=32, num_heads=4)

    print("KERNEL_OK")
</pallas_src>

<mosaic_0001>
module attributes {stable_mosaic.version = 11 : i64} {
  func.func @mha_kernel(%arg0: i32, %arg1: memref<8x64xf32, #tpu.memory_space<vmem>>, %arg2: memref<64x384xf32, #tpu.memory_space<vmem>>, %arg3: memref<1x384xf32, #tpu.memory_space<vmem>>, %arg4: memref<128x128xf32, #tpu.memory_space<vmem>>, %arg5: memref<1x128xf32, #tpu.memory_space<vmem>>, %arg6: memref<8x128xf32, #tpu.memory_space<vmem>>) attributes {dimension_semantics = [#tpu.dimension_semantics<parallel>], iteration_bounds = array<i64: 2>, scalar_prefetch = 0 : i64, scratch_operands = 0 : i64, tpu.core_type = #tpu.core_type<tc>, window_params = [{transform_indices = @transform_0, window_bounds = array<i64: 8, 64>}, {pipeline_mode = #tpu.pipeline_mode<synchronous>, transform_indices = @transform_1, window_bounds = array<i64: 64, 384>}, {pipeline_mode = #tpu.pipeline_mode<synchronous>, transform_indices = @transform_2, window_bounds = array<i64: 1, 384>}, {pipeline_mode = #tpu.pipeline_mode<synchronous>, transform_indices = @transform_3, window_bounds = array<i64: 128, 128>}, {pipeline_mode = #tpu.pipeline_mode<synchronous>, transform_indices = @transform_4, window_bounds = array<i64: 1, 128>}, {transform_indices = @transform_5, window_bounds = array<i64: 8, 128>}]} {
    %c0 = arith.constant 0 : index
    %c0_0 = arith.constant 0 : index
    %0 = vector.load %arg1[%c0, %c0_0] : memref<8x64xf32, #tpu.memory_space<vmem>>, vector<8x64xf32>
    %c0_1 = arith.constant 0 : index
    %c0_2 = arith.constant 0 : index
    %1 = vector.load %arg2[%c0_1, %c0_2] : memref<64x384xf32, #tpu.memory_space<vmem>>, vector<64x384xf32>
    %cst = arith.constant dense<0.000000e+00> : vector<8x384xf32>
    %2 = tpu.matmul %0, %1, %cst {dimension_numbers = #tpu.dot_dimension_numbers<[1], [0], [0], [1], [0, 0, 1, 1], [], []>} : vector<8x64xf32>, vector<64x384xf32>, vector<8x384xf32> -> vector<8x384xf32>
    %c0_3 = arith.constant 0 : index
    %c0_4 = arith.constant 0 : index
    %3 = vector.load %arg3[%c0_3, %c0_4] : memref<1x384xf32, #tpu.memory_space<vmem>>, vector<1x384xf32>
    %4 = vector.broadcast %3 : vector<1x384xf32> to vector<8x384xf32>
    %5 = arith.addf %2, %4 : vector<8x384xf32>
    %6 = vector.extract_strided_slice %5 {offsets = [0, 0], sizes = [8, 32], strides = [1, 1]} : vector<8x384xf32> to vector<8x32xf32>
    %7 = vector.extract_strided_slice %5 {offsets = [0, 32], sizes = [8, 32], strides = [1, 1]} : vector<8x384xf32> to vector<8x32xf32>
    %8 = vector.extract_strided_slice %5 {offsets = [0, 64], sizes = [8, 32], strides = [1, 1]} : vector<8x384xf32> to vector<8x32xf32>
    %9 = vector.extract_strided_slice %5 {offsets = [0, 96], sizes = [8, 32], strides = [1, 1]} : vector<8x384xf32> to vector<8x32xf32>
    %10 = vector.shape_cast %6 : vector<8x32xf32> to vector<1x8x32xf32>
    %11 = vector.shape_cast %7 : vector<8x32xf32> to vector<1x8x32xf32>
    %12 = vector.shape_cast %8 : vector<8x32xf32> to vector<1x8x32xf32>
    %13 = vector.shape_cast %9 : vector<8x32xf32> to vector<1x8x32xf32>
    %14 = tpu.concatenate %10, %11, %12, %13 in 0 : vector<1x8x32xf32>, vector<1x8x32xf32>, vector<1x8x32xf32>, vector<1x8x32xf32> -> vector<4x8x32xf32>
    %15 = vector.extract_strided_slice %5 {offsets = [0, 128], sizes = [8, 32], strides = [1, 1]} : vector<8x384xf32> to vector<8x32xf32>
    %16 = vector.extract_strided_slice %5 {offsets = [0, 160], sizes = [8, 32], strides = [1, 1]} : vector<8x384xf32> to vector<8x32xf32>
    %17 = vector.extract_strided_slice %5 {offsets = [0, 192], sizes = [8, 32], strides = [1, 1]} : vector<8x384xf32> to vector<8x32xf32>
    %18 = vector.extract_strided_slice %5 {offsets = [0, 224], sizes = [8, 32], strides = [1, 1]} : vector<8x384xf32> to vector<8x32xf32>
    %19 = vector.shape_cast %15 : vector<8x32xf32> to vector<1x8x32xf32>
    %20 = vector.shape_cast %16 : vector<8x32xf32> to vector<1x8x32xf32>
    %21 = vector.shape_cast %17 : vector<8x32xf32> to vector<1x8x32xf32>
    %22 = vector.shape_cast %18 : vector<8x32xf32> to vector<1x8x32xf32>
    %23 = tpu.concatenate %19, %20, %21, %22 in 0 : vector<1x8x32xf32>, vector<1x8x32xf32>, vector<1x8x32xf32>, vector<1x8x32xf32> -> vector<4x8x32xf32>
    %24 = vector.extract_strided_slice %5 {offsets = [0, 256], sizes = [8, 32], strides = [1, 1]} : vector<8x384xf32> to vector<8x32xf32>
    %25 = vector.extract_strided_slice %5 {offsets = [0, 288], sizes = [8, 32], strides = [1, 1]} : vector<8x384xf32> to vector<8x32xf32>
    %26 = vector.extract_strided_slice %5 {offsets = [0, 320], sizes = [8, 32], strides = [1, 1]} : vector<8x384xf32> to vector<8x32xf32>
    %27 = vector.extract_strided_slice %5 {offsets = [0, 352], sizes = [8, 32], strides = [1, 1]} : vector<8x384xf32> to vector<8x32xf32>
    %28 = vector.shape_cast %24 : vector<8x32xf32> to vector<1x8x32xf32>
    %29 = vector.shape_cast %25 : vector<8x32xf32> to vector<1x8x32xf32>
    %30 = vector.shape_cast %26 : vector<8x32xf32> to vector<1x8x32xf32>
    %31 = vector.shape_cast %27 : vector<8x32xf32> to vector<1x8x32xf32>
    %32 = tpu.concatenate %28, %29, %30, %31 in 0 : vector<1x8x32xf32>, vector<1x8x32xf32>, vector<1x8x32xf32>, vector<1x8x32xf32> -> vector<4x8x32xf32>
    "tpu.trace_start"() <{level = 10 : i32, message = "hqd,hkd->hqk"}> : () -> ()
    %cst_5 = arith.constant dense<0.000000e+00> : vector<4x8x8xf32>
    %33 = tpu.matmul %14, %23, %cst_5 {dimension_numbers = #tpu.dot_dimension_numbers<[2], [2], [1], [1], [0, 0, 0, 1, 1, 1], [0], [0]>} : vector<4x8x32xf32>, vector<4x8x32xf32>, vector<4x8x8xf32> -> vector<4x8x8xf32>
    "tpu.trace_stop"() : () -> ()
    %cst_6 = arith.constant dense<0xFF800000> : vector<4x8xf32>
    %34 = vector.multi_reduction <maximumf>, %33, %cst_6 [2] : vector<4x8x8xf32> to vector<4x8xf32>
    %35 = vector.shape_cast %34 : vector<4x8xf32> to vector<4x8x1xf32>
    %36 = vector.broadcast %35 : vector<4x8x1xf32> to vector<4x8x8xf32>
    %37 = arith.subf %33, %36 : vector<4x8x8xf32>
    %38 = math.exp %37 : vector<4x8x8xf32>
    %cst_7 = arith.constant dense<0.000000e+00> : vector<4x8xf32>
    %39 = vector.multi_reduction <add>, %38, %cst_7 [2] : vector<4x8x8xf32> to vector<4x8xf32>
    %40 = vector.shape_cast %39 : vector<4x8xf32> to vector<4x8x1xf32>
    "tpu.trace_start"() <{level = 10 : i32, message = "hqk,hkd->hqd"}> : () -> ()
    %cst_8 = arith.constant dense<0.000000e+00> : vector<4x8x32xf32>
    %41 = tpu.matmul %38, %32, %cst_8 {dimension_numbers = #tpu.dot_dimension_numbers<[2], [1], [1], [2], [0, 0, 0, 1, 1, 2], [0], [0]>} : vector<4x8x8xf32>, vector<4x8x32xf32>, vector<4x8x32xf32> -> vector<4x8x32xf32>
    "tpu.trace_stop"() : () -> ()
    %42 = vector.broadcast %40 : vector<4x8x1xf32> to vector<4x8x32xf32>
    %43 = arith.divf %41, %42 : vector<4x8x32xf32>
    %44 = vector.extract_strided_slice %43 {offsets = [0, 0, 0], sizes = [1, 8, 32], strides = [1, 1, 1]} : vector<4x8x32xf32> to vector<1x8x32xf32>
    %45 = vector.shape_cast %44 : vector<1x8x32xf32> to vector<8x32xf32>
    %46 = vector.extract_strided_slice %43 {offsets = [1, 0, 0], sizes = [1, 8, 32], strides = [1, 1, 1]} : vector<4x8x32xf32> to vector<1x8x32xf32>
    %47 = vector.shape_cast %46 : vector<1x8x32xf32> to vector<8x32xf32>
    %48 = vector.extract_strided_slice %43 {offsets = [2, 0, 0], sizes = [1, 8, 32], strides = [1, 1, 1]} : vector<4x8x32xf32> to vector<1x8x32xf32>
    %49 = vector.shape_cast %48 : vector<1x8x32xf32> to vector<8x32xf32>
    %50 = vector.extract_strided_slice %43 {offsets = [3, 0, 0], sizes = [1, 8, 32], strides = [1, 1, 1]} : vector<4x8x32xf32> to vector<1x8x32xf32>
    %51 = vector.shape_cast %50 : vector<1x8x32xf32> to vector<8x32xf32>
    %52 = tpu.concatenate %45, %47, %49, %51 in 1 : vector<8x32xf32>, vector<8x32xf32>, vector<8x32xf32>, vector<8x32xf32> -> vector<8x128xf32>
    %c0_9 = arith.constant 0 : index
    %c0_10 = arith.constant 0 : index
    %53 = vector.load %arg4[%c0_9, %c0_10] : memref<128x128xf32, #tpu.memory_space<vmem>>, vector<128x128xf32>
    %cst_11 = arith.constant dense<0.000000e+00> : vector<8x128xf32>
    %54 = tpu.matmul %52, %53, %cst_11 {dimension_numbers = #tpu.dot_dimension_numbers<[1], [0], [0], [1], [0, 0, 1, 1], [], []>} : vector<8x128xf32>, vector<128x128xf32>, vector<8x128xf32> -> vector<8x128xf32>
    %c0_12 = arith.constant 0 : index
    %c0_13 = arith.constant 0 : index
    %55 = vector.load %arg5[%c0_12, %c0_13] : memref<1x128xf32, #tpu.memory_space<vmem>>, vector<1x128xf32>
    %56 = vector.broadcast %55 : vector<1x128xf32> to vector<8x128xf32>
    %57 = arith.addf %54, %56 : vector<8x128xf32>
    %c0_14 = arith.constant 0 : index
    %c0_15 = arith.constant 0 : index
    %58 = vector.load %arg6[%c0_14, %c0_15] : memref<8x128xf32, #tpu.memory_space<vmem>>, vector<8x128xf32>
    tpu.vector_store %arg6[%c0_14, %c0_15], %57 {strides = array<i32>} : memref<8x128xf32, #tpu.memory_space<vmem>>, vector<8x128xf32>,
    return
  }
  func.func @transform_0(%arg0: i32) -> (i32, i32) {
    %c0_i32 = arith.constant 0 : i32
    %c0_i32_0 = arith.constant 0 : i32
    return %arg0, %c0_i32 : i32, i32
  }
  func.func @transform_1(%arg0: i32) -> (i32, i32) {
    %c0_i32 = arith.constant 0 : i32
    %c0_i32_0 = arith.constant 0 : i32
    %c0_i32_1 = arith.constant 0 : i32
    return %c0_i32, %c0_i32_0 : i32, i32
  }
  func.func @transform_2(%arg0: i32) -> (i32, i32) {
    %c0_i32 = arith.constant 0 : i32
    %c0_i32_0 = arith.constant 0 : i32
    %c0_i32_1 = arith.constant 0 : i32
    return %c0_i32, %c0_i32_0 : i32, i32
  }
  func.func @transform_3(%arg0: i32) -> (i32, i32) {
    %c0_i32 = arith.constant 0 : i32
    %c0_i32_0 = arith.constant 0 : i32
    %c0_i32_1 = arith.constant 0 : i32
    return %c0_i32, %c0_i32_0 : i32, i32
  }
  func.func @transform_4(%arg0: i32) -> (i32, i32) {
    %c0_i32 = arith.constant 0 : i32
    %c0_i32_0 = arith.constant 0 : i32
    %c0_i32_1 = arith.constant 0 : i32
    return %c0_i32, %c0_i32_0 : i32, i32
  }
  func.func @transform_5(%arg0: i32) -> (i32, i32) {
    %c0_i32 = arith.constant 0 : i32
    %c0_i32_0 = arith.constant 0 : i32
    return %arg0, %c0_i32 : i32, i32
  }
}

</mosaic_0001>

<llo_original>
// kernel: tpu_custom_call.1
$region0: #{tpu_custom_call.1}
  #allocation0 [shape = 'u32[]', space=smem, size = 0x4, offset = 0x4, fixed_abs, tag = 'smem constant byte address 0x4 - core index']
  #allocation1 [shape = 'u32[144,128]{1,0:T(1,128)}', space=vmem, size = 0x12000, scoped, tag = 'internal scratch']
  %s0 = inlined_call_operand.hbm [shape: f32[16,64], index: 0, kind: input, shape index: {}]
  %s1 = inlined_call_operand.hbm [shape: f32[64,384], index: 1, kind: input, shape index: {}]
  %s2 = inlined_call_operand.hbm [shape: f32[1,384], index: 2, kind: input, shape index: {}]
  %s3 = inlined_call_operand.hbm [shape: f32[128,128], index: 3, kind: input, shape index: {}]
  %s4 = inlined_call_operand.hbm [shape: f32[1,128], index: 4, kind: input, shape index: {}]
  %s5 = inlined_call_operand.hbm [shape: f32[16,128], index: 5, kind: output, shape index: {}]
  %s6 = sld [smem:[#allocation0]]
  $region73: #{tpu_custom_call.1} parent=0
    _
  %s8 = ssub.s32 1, %s6
  %s9 = scalar_select 0, %s8, %s6
  $region1: #{tpu_custom_call.1} parent=0
    #allocation2 [shape = 'u8[8192]{0}', space=vmem, size = 0x2000, scoped, tag = 'input window, operand 0']
    #allocation3 [shape = 's32[2]{0}', space=sflag, size = 0x8, scoped, tag = 'scoped memory for tpu_custom_call.1']
    #allocation4 [shape = 's32[2]{0}', space=sflag, size = 0x8, scoped, tag = 'scoped memory for tpu_custom_call.1']
    #allocation5 [shape = 'u8[98304]{0}', space=vmem, size = 0x18000, scoped, tag = 'input window, operand 1, single buffered']
    #allocation6 [shape = 's32[1]{0}', space=sflag, size = 0x4, scoped, tag = 'scoped memory for tpu_custom_call.1']
    #allocation7 [shape = 'u8[1536]{0}', space=vmem, size = 0x800, scoped, tag = 'input window, operand 2, single buffered']
    #allocation8 [shape = 'u8[65536]{0}', space=vmem, size = 0x10000, scoped, tag = 'input window, operand 3, single buffered']
    #allocation9 [shape = 's32[1]{0}', space=sflag, size = 0x4, scoped, tag = 'scoped memory for tpu_custom_call.1']
    #allocation10 [shape = 'u8[512]{0}', space=vmem, size = 0x400, scoped, tag = 'input window, operand 4, single buffered']
    #allocation11 [shape = 'u8[8192]{0}', space=vmem, size = 0x2000, scoped, tag = 'output window, operand 0']
    %10 = vsyncpa [#allocation3], 0
    %s11 = scalar_lea.sflag [#allocation3], 1
    %12 = vsyncpa %s11, 0
    %13 = vsyncpa [#allocation6], 0
    %14 = vsyncpa [#allocation9], 0
    %15 = vsyncpa [#allocation4], 0
    %s16 = scalar_lea.sflag [#allocation4], 1
    %17 = vsyncpa %s16, 0
    loop: start=0, step=1, limit=4
    $region2: #{tpu_custom_call.1} parent=1 // loop_pre_header
      _
    $region3: #{tpu_custom_call.1} parent=1 // loop_header
      %s19 = sphi 0, %s23
      %p20 = scmp.ge.s32.totalorder %s19, 4
      %s29 = sphi 0, %s31
      %s32 = sphi 0, %s29
      %s33 = sphi 0, %s32
      %s49 = sphi 0, %s33
      %s53 = sphi 0, %s53
      %s55 = sphi 0, %s53
      %s56 = sphi 0, %s55
      %s70 = sphi 0, %s56
      %s74 = sphi 0, %s74
      %s76 = sphi 0, %s74
      %s77 = sphi 0, %s76
      %s91 = sphi 0, %s77
      %s95 = sphi 0, %s95
      %s97 = sphi 0, %s95
      %s98 = sphi 0, %s97
      %s112 = sphi 0, %s98
      %s116 = sphi 0, %s116
      %s118 = sphi 0, %s116
      %s119 = sphi 0, %s118
      %s133 = sphi 0, %s119
      %s139 = sphi 0, %s141
      %s142 = sphi 0, %s139
      %s143 = sphi 0, %s142
      %s159 = sphi 0, %s143
    $region4: #{tpu_custom_call.1} parent=1 // loop_header_branch
      %22 = sbr.rel (%p20) target = $region8
    $region5: #{tpu_custom_call.1} parent=1 // loop_body
      %s24 = ssub.s32 %s19, 1
      %s25 = ssub.s32 %s19, 2
      %s26 = sadd.s32 %s19, 1
      %s27 = ssub.s32 %s19, %s26
      %p28 = scmp.eq.s32.totalorder %s27, 0
      %s30 = sadd.s32 %s29, 1
      %s31 = scalar_select %p28, %s29, %s30
      %p34 = pneg %p28
      %p35 = scmp.eq.s32.totalorder %s19, 1
      %p36 = por %p34, %p35
      %p37 = scmp.ne.s32.totalorder %s29, %s32
      %p38 = scmp.eq.s32.totalorder %s19, 0
      %p39 = por %p37, %p38
      %p40 = scmp.ne.s32.totalorder %s29, %s32
      %p41 = scmp.eq.s32.totalorder %s24, 1
      %p42 = por %p40, %p41
      %p43 = scmp.ne.s32.totalorder %s32, %s33
      %p44 = scmp.eq.s32.totalorder %s24, 0
      %p45 = por %p43, %p44
      %p46 = scmp.ne.s32.totalorder %s32, %s33
      %p47 = scmp.eq.s32.totalorder %s25, 1
      %p48 = por %p46, %p47
      %p50 = scmp.ne.s32.totalorder %s33, %s49
      %p51 = scmp.eq.s32.totalorder %s25, 0
      %p52 = por %p50, %p51
      %s54 = sadd.s32 %s53, 1
      %p57 = scmp.eq.s32.totalorder %s19, 1
      %p58 = scmp.ne.s32.totalorder %s53, %s55
      %p59 = scmp.eq.s32.totalorder %s19, 0
      %p60 = por %p58, %p59
      %p61 = scmp.ne.s32.totalorder %s53, %s55
      %p62 = scmp.eq.s32.totalorder %s24, 1
      %p63 = por %p61, %p62
      %p64 = scmp.ne.s32.totalorder %s55, %s56
      %p65 = scmp.eq.s32.totalorder %s24, 0
      %p66 = por %p64, %p65
      %p67 = scmp.ne.s32.totalorder %s55, %s56
      %p68 = scmp.eq.s32.totalorder %s25, 1
      %p69 = por %p67, %p68
      %p71 = scmp.ne.s32.totalorder %s56, %s70
      %p72 = scmp.eq.s32.totalorder %s25, 0
      %p73 = por %p71, %p72
      %s75 = sadd.s32 %s74, 1
      %p78 = scmp.eq.s32.totalorder %s19, 1
      %p79 = scmp.ne.s32.totalorder %s74, %s76
      %p80 = scmp.eq.s32.totalorder %s19, 0
      %p81 = por %p79, %p80
      %p82 = scmp.ne.s32.totalorder %s74, %s76
      %p83 = scmp.eq.s32.totalorder %s24, 1
      %p84 = por %p82, %p83
      %p85 = scmp.ne.s32.totalorder %s76, %s77
      %p86 = scmp.eq.s32.totalorder %s24, 0
      %p87 = por %p85, %p86
      %p88 = scmp.ne.s32.totalorder %s76, %s77
      %p89 = scmp.eq.s32.totalorder %s25, 1
      %p90 = por %p88, %p89
      %p92 = scmp.ne.s32.totalorder %s77, %s91
      %p93 = scmp.eq.s32.totalorder %s25, 0
      %p94 = por %p92, %p93
      %s96 = sadd.s32 %s95, 1
      %p99 = scmp.eq.s32.totalorder %s19, 1
      %p100 = scmp.ne.s32.totalorder %s95, %s97
      %p101 = scmp.eq.s32.totalorder %s19, 0
      %p102 = por %p100, %p101
      %p103 = scmp.ne.s32.totalorder %s95, %s97
      %p104 = scmp.eq.s32.totalorder %s24, 1
      %p105 = por %p103, %p104
      %p106 = scmp.ne.s32.totalorder %s97, %s98
      %p107 = scmp.eq.s32.totalorder %s24, 0
      %p108 = por %p106, %p107
      %p109 = scmp.ne.s32.totalorder %s97, %s98
      %p110 = scmp.eq.s32.totalorder %s25, 1
      %p111 = por %p109, %p110
      %p113 = scmp.ne.s32.totalorder %s98, %s112
      %p114 = scmp.eq.s32.totalorder %s25, 0
      %p115 = por %p113, %p114
      %s117 = sadd.s32 %s116, 1
      %p120 = scmp.eq.s32.totalorder %s19, 1
      %p121 = scmp.ne.s32.totalorder %s116, %s118
      %p122 = scmp.eq.s32.totalorder %s19, 0
      %p123 = por %p121, %p122
      %p124 = scmp.ne.s32.totalorder %s116, %s118
      %p125 = scmp.eq.s32.totalorder %s24, 1
      %p126 = por %p124, %p125
      %p127 = scmp.ne.s32.totalorder %s118, %s119
      %p128 = scmp.eq.s32.totalorder %s24, 0
      %p129 = por %p127, %p128
      %p130 = scmp.ne.s32.totalorder %s118, %s119
      %p131 = scmp.eq.s32.totalorder %s25, 1
      %p132 = por %p130, %p131
      %p134 = scmp.ne.s32.totalorder %s119, %s133
      %p135 = scmp.eq.s32.totalorder %s25, 0
      %p136 = por %p134, %p135
      %s137 = ssub.s32 %s19, %s26
      %p138 = scmp.eq.s32.totalorder %s137, 0
      %s140 = sadd.s32 %s139, 1
      %s141 = scalar_select %p138, %s139, %s140
      %p144 = pneg %p138
      %p145 = scmp.eq.s32.totalorder %s19, 1
      %p146 = por %p144, %p145
      %p147 = scmp.ne.s32.totalorder %s139, %s142
      %p148 = scmp.eq.s32.totalorder %s19, 0
      %p149 = por %p147, %p148
      %p150 = scmp.ne.s32.totalorder %s139, %s142
      %p151 = scmp.eq.s32.totalorder %s24, 1
      %p152 = por %p150, %p151
      %p153 = scmp.ne.s32.totalorder %s142, %s143
      %p154 = scmp.eq.s32.totalorder %s24, 0
      %p155 = por %p153, %p154
      %p156 = scmp.ne.s32.totalorder %s142, %s143
      %p157 = scmp.eq.s32.totalorder %s25, 1
      %p158 = por %p156, %p157
      %p160 = scmp.ne.s32.totalorder %s143, %s159
      %p161 = scmp.eq.s32.totalorder %s25, 0
      %p162 = por %p160, %p161
      %p163 = scmp.le.s32.totalorder 1, %s19
      %p164 = scmp.lt.s32.totalorder %s19, 3
      %p165 = pnand %p163, %p164
      %p166 = pneg %p165
      // Predicated region
      $region9: #{tpu_custom_call.1} parent=5 // pred_check
        _
      $region10: #{tpu_custom_call.1} parent=5 // pred_check_branch
        %168 = sbr.rel (%p165) target = $region12
      $region11: #{tpu_custom_call.1} parent=5 // pred_region
        %s169 = ssub.s32 %s19, 1
        // Predicated region
        $region13: #{tpu_custom_call.1} parent=11 // pred_check
          %p170 = pneg %p66
        $region14: #{tpu_custom_call.1} parent=11 // pred_check_branch
          %172 = sbr.rel (%p170) target = $region16
        $region15: #{tpu_custom_call.1} parent=11 // pred_region
          %s174 = ssub.s32 3072, 3072
          %175 = vsyncadd [#allocation6], %s174
          %s176 = sshll.u32 [#allocation5], 4
          %s177 = int_to_ptr.vmem [resolvable:$true] %s176
          %182 = dma.hbm_to_vmem [thread:$0]  %s1, 3072, %s177, [#allocation6], 384, 384, 24
        $region16: #{tpu_custom_call.1} parent=11 // pred_fallthru
          _
        // Predicated region
        $region17: #{tpu_custom_call.1} parent=11 // pred_check
          %p183 = pneg %p87
        $region18: #{tpu_custom_call.1} parent=11 // pred_check_branch
          %185 = sbr.rel (%p183) target = $region20
        $region19: #{tpu_custom_call.1} parent=11 // pred_region
          %s187 = ssub.s32 48, 48
          %188 = vsyncadd [#allocation6], %s187
          %s190 = sshll.u32 [#allocation7], 4
          %s191 = int_to_ptr.vmem [resolvable:$true] %s190
          %193 = dma.hbm_to_vmem [thread:$0]  %s2, 48, %s191, [#allocation6]
        $region20: #{tpu_custom_call.1} parent=11 // pred_fallthru
          _
        // Predicated region
        $region21: #{tpu_custom_call.1} parent=11 // pred_check
          %p194 = pneg %p108
        $region22: #{tpu_custom_call.1} parent=11 // pred_check_branch
          %196 = sbr.rel (%p194) target = $region24
        $region23: #{tpu_custom_call.1} parent=11 // pred_region
          %s198 = ssub.s32 2048, 2048
          %199 = vsyncadd [#allocation9], %s198
          %s200 = sshll.u32 [#allocation8], 4
          %s201 = int_to_ptr.vmem [resolvable:$true] %s200
          %206 = dma.hbm_to_vmem [thread:$0]  %s3, 2048, %s201, [#allocation9], 128, 128, 8
        $region24: #{tpu_custom_call.1} parent=11 // pred_fallthru
          _
        // Predicated region
        $region25: #{tpu_custom_call.1} parent=11 // pred_check
          %p207 = pneg %p129
        $region26: #{tpu_custom_call.1} parent=11 // pred_check_branch
          %209 = sbr.rel (%p207) target = $region28
        $region27: #{tpu_custom_call.1} parent=11 // pred_region
          %s211 = ssub.s32 16, 16
          %212 = vsyncadd [#allocation9], %s211
          %s214 = sshll.u32 [#allocation10], 4
          %s215 = int_to_ptr.vmem [resolvable:$true] %s214
          %217 = dma.hbm_to_vmem [thread:$0]  %s4, 16, %s215, [#allocation9]
        $region28: #{tpu_custom_call.1} parent=11 // pred_fallthru
          _
      $region12: #{tpu_custom_call.1} parent=5 // pred_fallthru
        _
      %p218 = scmp.lt.s32.totalorder %s19, 2
      // Predicated region
      $region29: #{tpu_custom_call.1} parent=5 // pred_check
        %p219 = pneg %p218
      $region30: #{tpu_custom_call.1} parent=5 // pred_check_branch
        %221 = sbr.rel (%p219) target = $region32
      $region31: #{tpu_custom_call.1} parent=5 // pred_region
        // Predicated region
        $region33: #{tpu_custom_call.1} parent=31 // pred_check
          %p222 = pneg %p39
        $region34: #{tpu_custom_call.1} parent=31 // pred_check_branch
          %224 = sbr.rel (%p222) target = $region36
        $region35: #{tpu_custom_call.1} parent=31 // pred_region
          %s225 = sand.u32 %s29, 1
          %s226 = scalar_lea.sflag [#allocation3], %s225
          %s227 = sand.u32 %s29, 1
          %s228 = smul.addr %s227, 8
          %s229 = scalar_lea.vmem [#allocation2], %s228
          %s231 = ssub.s32 128, 128
          %232 = vsyncadd %s226, %s231
          %s233 = smul.addr %s19, 128
          %s234 = scalar_lea.hbm %s0, %s233
          %s236 = sshll.u32 %s229, 4
          %s237 = int_to_ptr.vmem [resolvable:$true] %s236
          %239 = dma.hbm_to_vmem [thread:$0]  %s234, 128, %s237, %s226
        $region36: #{tpu_custom_call.1} parent=31 // pred_fallthru
          _
      $region32: #{tpu_custom_call.1} parent=5 // pred_fallthru
        _
      %p240 = scmp.le.s32.totalorder 1, %s19
      %p241 = scmp.lt.s32.totalorder %s19, 3
      %p242 = pnand %p240, %p241
      %p243 = pneg %p242
      // Predicated region
      $region37: #{tpu_custom_call.1} parent=5 // pred_check
        _
      $region38: #{tpu_custom_call.1} parent=5 // pred_check_branch
        %245 = sbr.rel (%p242) target = $region40
      $region39: #{tpu_custom_call.1} parent=5 // pred_region
        %s246 = ssub.s32 %s19, 1
        %s247 = sand.u32 %s32, 1
        %s248 = scalar_lea.sflag [#allocation3], %s247
        %s249 = sand.u32 %s32, 1
        %s250 = smul.addr %s249, 8
        %s251 = scalar_lea.vmem [#allocation2], %s250
        // Predicated region
        $region41: #{tpu_custom_call.1} parent=39 // pred_check
          %p252 = pneg %p45
        $region42: #{tpu_custom_call.1} parent=39 // pred_check_branch
          %254 = sbr.rel (%p252) target = $region44
        $region43: #{tpu_custom_call.1} parent=39 // pred_region
          %255 = dma.done %s248, 128
        $region44: #{tpu_custom_call.1} parent=39 // pred_fallthru
          _
        // Predicated region
        $region45: #{tpu_custom_call.1} parent=39 // pred_check
          %p256 = pneg %p66
        $region46: #{tpu_custom_call.1} parent=39 // pred_check_branch
          %258 = sbr.rel (%p256) target = $region48
        $region47: #{tpu_custom_call.1} parent=39 // pred_region
          %259 = dma.done [#allocation6], 3072
        $region48: #{tpu_custom_call.1} parent=39 // pred_fallthru
          _
        // Predicated region
        $region49: #{tpu_custom_call.1} parent=39 // pred_check
          %p260 = pneg %p87
        $region50: #{tpu_custom_call.1} parent=39 // pred_check_branch
          %262 = sbr.rel (%p260) target = $region52
        $region51: #{tpu_custom_call.1} parent=39 // pred_region
          %263 = dma.done [#allocation6], 48
        $region52: #{tpu_custom_call.1} parent=39 // pred_fallthru
          _
        // Predicated region
        $region53: #{tpu_custom_call.1} parent=39 // pred_check
          %p264 = pneg %p108
        $region54: #{tpu_custom_call.1} parent=39 // pred_check_branch
          %266 = sbr.rel (%p264) target = $region56
        $region55: #{tpu_custom_call.1} parent=39 // pred_region
          %267 = dma.done [#allocation9], 2048
        $region56: #{tpu_custom_call.1} parent=39 // pred_fallthru
          _
        // Predicated region
        $region57: #{tpu_custom_call.1} parent=39 // pred_check
          %p268 = pneg %p129
        $region58: #{tpu_custom_call.1} parent=39 // pred_check_branch
          %270 = sbr.rel (%p268) target = $region60
        $region59: #{tpu_custom_call.1} parent=39 // pred_region
          %271 = dma.done [#allocation9], 16
        $region60: #{tpu_custom_call.1} parent=39 // pred_fallthru
          _
        %s272 = sand.u32 %s32, 1
        %s273 = scalar_lea.sflag [#allocation3], %s272
        %s274 = sand.u32 %s32, 1
        %s275 = smul.addr %s274, 8
        %s276 = scalar_lea.vmem [#allocation2], %s275
        %p277 = pneg %p45
        %p278 = pneg %p42
        %p279 = pneg %p66
        %p280 = pneg %p63
        %p281 = pneg %p87
        %p282 = pneg %p84
        %p283 = pneg %p108
        %p284 = pneg %p105
        %p285 = pneg %p129
        %p286 = pneg %p126
        %p287 = pneg %p155
        %p288 = pneg %p152
        %s289 = sand.u32 %s142, 1
        %s290 = scalar_lea.sflag [#allocation4], %s289
        %s291 = sand.u32 %s142, 1
        %s292 = smul.addr %s291, 8
        %s293 = scalar_lea.vmem [#allocation11], %s292
        %v294 = vld [vmem:[%s251] sm:$0xff]
        %v295 = vld [vmem:[#allocation5] sm:$0xff]
        %v296 = vld [vmem:[#allocation5 + $0x8] sm:$0xff]
        %v297 = vld [vmem:[#allocation5 + $0x10] sm:$0xff]
        %v298 = vld [vmem:[#allocation5 + $0x18] sm:$0xff]
        %v299 = vld [vmem:[#allocation5 + $0x20] sm:$0xff]
        %v300 = vld [vmem:[#allocation5 + $0x28] sm:$0xff]
        %v301 = vld [vmem:[#allocation5 + $0x30] sm:$0xff]
        %v302 = vld [vmem:[#allocation5 + $0x38] sm:$0xff]
        %v303 = vld [vmem:[#allocation5 + $0x40] sm:$0xff]
        %v304 = vld [vmem:[#allocation5 + $0x48] sm:$0xff]
        %v305 = vld [vmem:[#allocation5 + $0x50] sm:$0xff]
        %v306 = vld [vmem:[#allocation5 + $0x58] sm:$0xff]
        %v307 = vld [vmem:[#allocation5 + $0x60] sm:$0xff]
        %v308 = vld [vmem:[#allocation5 + $0x68] sm:$0xff]
        %v309 = vld [vmem:[#allocation5 + $0x70] sm:$0xff]
        %v310 = vld [vmem:[#allocation5 + $0x78] sm:$0xff]
        %v311 = vld [vmem:[#allocation5 + $0x80] sm:$0xff]
        %v312 = vld [vmem:[#allocation5 + $0x88] sm:$0xff]
        %v313 = vld [vmem:[#allocation5 + $0x90] sm:$0xff]
        %v314 = vld [vmem:[#allocation5 + $0x98] sm:$0xff]
        %v315 = vld [vmem:[#allocation5 + $0xa0] sm:$0xff]
        %v316 = vld [vmem:[#allocation5 + $0xa8] sm:$0xff]
        %v317 = vld [vmem:[#allocation5 + $0xb0] sm:$0xff]
        %v318 = vld [vmem:[#allocation5 + $0xb8] sm:$0xff]
        %v319 = vld [vmem:[#allocation7] sm:$0x7]
        %v321 = vlaneseq
        %v322 = vshrl.u32 %v321, 7
        %v323 = vsub.s32 0, %v322
        %v324 = vrot.slane %v319, %v323
        %v325 = vlaneseq
        %v326 = vshrl.u32 %v325, 7
        %v327 = vsub.s32 1, %v326
        %v328 = vrot.slane %v319, %v327
        %v329 = vlaneseq
        %v330 = vshrl.u32 %v329, 7
        %v331 = vsub.s32 2, %v330
        %v332 = vrot.slane %v319, %v331
        %vm336 = vcmask 523264
        %v338 = vsel %vm336, %v294, 0
        %340 = vmatprep.subr.mxu0 %v296
        %341 = vmatpush1.msra.mxu0 %v295
        %342 = vmatprep.subr.mxu0 %v299
        %343 = vmatpush1.msra.mxu0 %v298
        %344 = vmatprep.subr.mxu0 %v302
        %345 = vmatpush1.msra.mxu0 %v301
        %346 = vmatprep.subr.mxu0 %v305
        %347 = vmatpush1.msra.mxu0 %v304
        %348 = vmatprep.subr.mxu0 %v308
        %349 = vmatpush1.msra.mxu0 %v307
        %350 = vmatprep.subr.mxu0 %v311
        %351 = vmatpush1.msra.mxu0 %v310
        %352 = vmatprep.subr.mxu0 %v314
        %353 = vmatpush1.msra.mxu0 %v313
        %354 = vmatprep.subr.mxu0 %v317
        %355 = vmatpush1.msra.mxu0 %v316
        %356 = vmatprep.subr.mxu0 0.0
        %357 = vmatpush1.msra.mxu0 0.0
        %358 = vmatprep.subr.mxu0 0.0
        %359 = vmatpush1.msra.mxu0 0.0
        %360 = vmatprep.subr.mxu0 0.0
        %361 = vmatpush1.msra.mxu0 0.0
        %362 = vmatprep.subr.mxu0 0.0
        %363 = vmatpush1.msra.mxu0 0.0
        %364 = vmatprep.subr.mxu0 0.0
        %365 = vmatpush1.msra.mxu0 0.0
        %366 = vmatprep.subr.mxu0 0.0
        %367 = vmatpush1.msra.mxu0 0.0
        %368 = vmatprep.subr.mxu0 0.0
        %369 = vmatpush1.msra.mxu0 0.0
        %370 = vmatprep.subr.mxu0 0.0
        %371 = vmatpush1.msra.mxu0 0.0
        %372 = vmatprep.subr.mxu0 0.0
        %373 = vmatpush1.msra.mxu0 0.0
        %374 = vmatprep.subr.mxu0 0.0
        %375 = vmatpush1.msra.mxu0 0.0
        %376 = vmatprep.subr.mxu0 0.0
        %377 = vmatpush1.msra.mxu0 0.0
        %378 = vmatprep.subr.mxu0 0.0
        %379 = vmatpush1.msra.mxu0 0.0
        %380 = vmatprep.subr.mxu0 0.0
        %381 = vmatpush1.msra.mxu0 0.0
        %382 = vmatprep.subr.mxu0 0.0
        %383 = vmatpush1.msra.mxu0 0.0
        %384 = vmatprep.subr.mxu0 0.0
        %385 = vmatpush1.msra.mxu0 0.0
        %386 = vmatprep.subr.mxu0 0.0
        %387 = vmatpush1.msra.mxu0 0.0
        %388 = vmatprep.subr.mxu0 0.0
        %389 = vmatpush1.msra.mxu0 0.0
        %390 = vmatprep.subr.mxu0 0.0
        %391 = vmatpush1.msra.mxu0 0.0
        %392 = vmatprep.subr.mxu0 0.0
        %393 = vmatpush1.msra.mxu0 0.0
        %394 = vmatprep.subr.mxu0 0.0
        %395 = vmatpush1.msra.mxu0 0.0
        %396 = vmatprep.subr.mxu0 0.0
        %397 = vmatpush1.msra.mxu0 0.0
        %398 = vmatprep.subr.mxu0 0.0
        %399 = vmatpush1.msra.mxu0 0.0
        %400 = vmatprep.subr.mxu0 0.0
        %401 = vmatpush1.msra.mxu0 0.0
        %402 = vmatprep.subr.mxu0 0.0
        %403 = vmatpush1.msra.mxu0 0.0
        %404 = vmatprep.mubr.f32.mxu0 0.0
        %405 = vmatmul.mubr.f32.gmra.mrb[0].mxu0 %v338
        %v406 = vpop.f32.mrb[0].mxu0
        %v407 = vadd.f32 %v324, %v406
        %v408 = vpop.f32.mrb[0].mxu0
        %v409 = vadd.f32 %v328, %v408
        %410 = vdwg.mxu0
        %411 = vmatprep.subr.mxu0 0.0
        %412 = vmatpush1.msra.mxu0 %v297
        %413 = vmatprep.subr.mxu0 0.0
        %414 = vmatpush1.msra.mxu0 %v300
        %415 = vmatprep.subr.mxu0 0.0
        %416 = vmatpush1.msra.mxu0 %v303
        %417 = vmatprep.subr.mxu0 0.0
        %418 = vmatpush1.msra.mxu0 %v306
        %419 = vmatprep.subr.mxu0 0.0
        %420 = vmatpush1.msra.mxu0 %v309
        %421 = vmatprep.subr.mxu0 0.0
        %422 = vmatpush1.msra.mxu0 %v312
        %423 = vmatprep.subr.mxu0 0.0
        %424 = vmatpush1.msra.mxu0 %v315
        %425 = vmatprep.subr.mxu0 0.0
        %426 = vmatpush1.msra.mxu0 %v318
        %427 = vmatprep.subr.mxu0 0.0
        %428 = vmatpush1.msra.mxu0 0.0
        %429 = vmatprep.subr.mxu0 0.0
        %430 = vmatpush1.msra.mxu0 0.0
        %431 = vmatprep.subr.mxu0 0.0
        %432 = vmatpush1.msra.mxu0 0.0
        %433 = vmatprep.subr.mxu0 0.0
        %434 = vmatpush1.msra.mxu0 0.0
        %435 = vmatprep.subr.mxu0 0.0
        %436 = vmatpush1.msra.mxu0 0.0
        %437 = vmatprep.subr.mxu0 0.0
        %438 = vmatpush1.msra.mxu0 0.0
        %439 = vmatprep.subr.mxu0 0.0
        %440 = vmatpush1.msra.mxu0 0.0
        %441 = vmatprep.subr.mxu0 0.0
        %442 = vmatpush1.msra.mxu0 0.0
        %443 = vmatprep.subr.mxu0 0.0
        %444 = vmatpush1.msra.mxu0 0.0
        %445 = vmatprep.subr.mxu0 0.0
        %446 = vmatpush1.msra.mxu0 0.0
        %447 = vmatprep.subr.mxu0 0.0
        %448 = vmatpush1.msra.mxu0 0.0
        %449 = vmatprep.subr.mxu0 0.0
        %450 = vmatpush1.msra.mxu0 0.0
        %451 = vmatprep.subr.mxu0 0.0
        %452 = vmatpush1.msra.mxu0 0.0
        %453 = vmatprep.subr.mxu0 0.0
        %454 = vmatpush1.msra.mxu0 0.0
        %455 = vmatprep.subr.mxu0 0.0
        %456 = vmatpush1.msra.mxu0 0.0
        %457 = vmatprep.subr.mxu0 0.0
        %458 = vmatpush1.msra.mxu0 0.0
        %459 = vmatprep.subr.mxu0 0.0
        %460 = vmatpush1.msra.mxu0 0.0
        %461 = vmatprep.subr.mxu0 0.0
        %462 = vmatpush1.msra.mxu0 0.0
        %463 = vmatprep.subr.mxu0 0.0
        %464 = vmatpush1.msra.mxu0 0.0
        %465 = vmatprep.subr.mxu0 0.0
        %466 = vmatpush1.msra.mxu0 0.0
        %467 = vmatprep.subr.mxu0 0.0
        %468 = vmatpush1.msra.mxu0 0.0
        %469 = vmatprep.subr.mxu0 0.0
        %470 = vmatpush1.msra.mxu0 0.0
        %471 = vmatprep.subr.mxu0 0.0
        %472 = vmatpush1.msra.mxu0 0.0
        %473 = vmatprep.subr.mxu0 0.0
        %474 = vmatpush1.msra.mxu0 0.0
        %475 = vmatprep.mubr.f32.mxu0 0.0
        %476 = vmatmul.mubr.f32.gmra.mrb[0].mxu0 %v338
        %v477 = vpop.f32.mrb[0].mxu0
        %v478 = vadd.f32 %v332, %v477
        %v479 = vpop.f32.mrb[0].mxu0
        %480 = vdwg.mxu0
        %482 = vrot.lane.b32.xlu0 %v407, 96
        %v483 = vpop.permute.xlu0 %482
        %484 = vrot.lane.b32.xlu0 %v407, 64
        %v485 = vpop.permute.xlu0 %484
        %486 = vrot.lane.b32.xlu0 %v407, 32
        %v487 = vpop.permute.xlu0 %486
        %489 = vrot.lane.b32.xlu0 %v409, 96
        %v490 = vpop.permute.xlu0 %489
        %491 = vrot.lane.b32.xlu0 %v409, 64
        %v492 = vpop.permute.xlu0 %491
        %493 = vrot.lane.b32.xlu0 %v409, 32
        %v494 = vpop.permute.xlu0 %493
        %496 = vrot.lane.b32.xlu0 %v478, 96
        %v497 = vpop.permute.xlu0 %496
        %499 = vrot.lane.b32.xlu0 %v478, 64
        %v500 = vpop.permute.xlu0 %499
        %502 = vrot.lane.b32.xlu0 %v478, 32
        %v503 = vpop.permute.xlu0 %502
        %vm505 = vcmask 261120
        %v506 = vsel %vm505, %v407, 0
        %v508 = vsel %vm505, %v409, 0
        %510 = vmatprep.subr.mxu0 0.0
        %511 = vmatpush1.xpose.msra.mxu0 %v508
        %512 = vmatprep.subr.mxu0 0.0
        %513 = vmatpush1.xpose.msra.mxu0 0.0
        %514 = vmatprep.subr.mxu0 0.0
        %515 = vmatpush1.xpose.msra.mxu0 0.0
        %516 = vmatprep.subr.mxu0 0.0
        %517 = vmatpush1.xpose.msra.mxu0 0.0
        %518 = vmatprep.subr.mxu0 0.0
        %519 = vmatpush1.xpose.msra.mxu0 0.0
        %520 = vmatprep.subr.mxu0 0.0
        %521 = vmatpush1.xpose.msra.mxu0 0.0
        %522 = vmatprep.subr.mxu0 0.0
        %523 = vmatpush1.xpose.msra.mxu0 0.0
        %524 = vmatprep.subr.mxu0 0.0
        %525 = vmatpush1.xpose.msra.mxu0 0.0
        %526 = vmatprep.subr.mxu0 0.0
        %527 = vmatpush1.xpose.msra.mxu0 0.0
        %528 = vmatprep.subr.mxu0 0.0
        %529 = vmatpush1.xpose.msra.mxu0 0.0
        %530 = vmatprep.subr.mxu0 0.0
        %531 = vmatpush1.xpose.msra.mxu0 0.0
        %532 = vmatprep.subr.mxu0 0.0
        %533 = vmatpush1.xpose.msra.mxu0 0.0
        %534 = vmatprep.subr.mxu0 0.0
        %535 = vmatpush1.xpose.msra.mxu0 0.0
        %536 = vmatprep.subr.mxu0 0.0
        %537 = vmatpush1.xpose.msra.mxu0 0.0
        %538 = vmatprep.subr.mxu0 0.0
        %539 = vmatpush1.xpose.msra.mxu0 0.0
        %540 = vmatprep.subr.mxu0 0.0
        %541 = vmatpush1.xpose.msra.mxu0 0.0
        %542 = vmatprep.subr.mxu0 0.0
        %543 = vmatpush1.xpose.msra.mxu0 0.0
        %544 = vmatprep.subr.mxu0 0.0
        %545 = vmatpush1.xpose.msra.mxu0 0.0
        %546 = vmatprep.subr.mxu0 0.0
        %547 = vmatpush1.xpose.msra.mxu0 0.0
        %548 = vmatprep.subr.mxu0 0.0
        %549 = vmatpush1.xpose.msra.mxu0 0.0
        %550 = vmatprep.subr.mxu0 0.0
        %551 = vmatpush1.xpose.msra.mxu0 0.0
        %552 = vmatprep.subr.mxu0 0.0
        %553 = vmatpush1.xpose.msra.mxu0 0.0
        %554 = vmatprep.subr.mxu0 0.0
        %555 = vmatpush1.xpose.msra.mxu0 0.0
        %556 = vmatprep.subr.mxu0 0.0
        %557 = vmatpush1.xpose.msra.mxu0 0.0
        %558 = vmatprep.subr.mxu0 0.0
        %559 = vmatpush1.xpose.msra.mxu0 0.0
        %560 = vmatprep.subr.mxu0 0.0
        %561 = vmatpush1.xpose.msra.mxu0 0.0
        %562 = vmatprep.subr.mxu0 0.0
        %563 = vmatpush1.xpose.msra.mxu0 0.0
        %564 = vmatprep.subr.mxu0 0.0
        %565 = vmatpush1.xpose.msra.mxu0 0.0
        %566 = vmatprep.subr.mxu0 0.0
        %567 = vmatpush1.xpose.msra.mxu0 0.0
        %568 = vmatprep.subr.mxu0 0.0
        %569 = vmatpush1.xpose.msra.mxu0 0.0
        %570 = vmatprep.subr.mxu0 0.0
        %571 = vmatpush1.xpose.msra.mxu0 0.0
        %572 = vmatprep.subr.mxu0 0.0
        %573 = vmatpush1.xpose.msra.mxu0 0.0
        %574 = vmatprep.mubr.f32.mxu0 0.0
        %575 = vmatmul.mubr.f32.gmra.mrb[0].mxu0 %v506
        %v576 = vpop.f32.mrb[0].mxu0
        %v577 = vadd.f32 0.0, %v576
        %v578 = vpop.f32.mrb[0].mxu0
        %579 = vdwg.mxu0
        %v580 = vsel %vm505, %v483, 0
        %v582 = vsel %vm505, %v490, 0
        %584 = vmatprep.subr.mxu0 0.0
        %585 = vmatpush1.xpose.msra.mxu0 %v582
        %586 = vmatprep.subr.mxu0 0.0
        %587 = vmatpush1.xpose.msra.mxu0 0.0
        %588 = vmatprep.subr.mxu0 0.0
        %589 = vmatpush1.xpose.msra.mxu0 0.0
        %590 = vmatprep.subr.mxu0 0.0
        %591 = vmatpush1.xpose.msra.mxu0 0.0
        %592 = vmatprep.subr.mxu0 0.0
        %593 = vmatpush1.xpose.msra.mxu0 0.0
        %594 = vmatprep.subr.mxu0 0.0
        %595 = vmatpush1.xpose.msra.mxu0 0.0
        %596 = vmatprep.subr.mxu0 0.0
        %597 = vmatpush1.xpose.msra.mxu0 0.0
        %598 = vmatprep.subr.mxu0 0.0
        %599 = vmatpush1.xpose.msra.mxu0 0.0
        %600 = vmatprep.subr.mxu0 0.0
        %601 = vmatpush1.xpose.msra.mxu0 0.0
        %602 = vmatprep.subr.mxu0 0.0
        %603 = vmatpush1.xpose.msra.mxu0 0.0
        %604 = vmatprep.subr.mxu0 0.0
        %605 = vmatpush1.xpose.msra.mxu0 0.0
        %606 = vmatprep.subr.mxu0 0.0
        %607 = vmatpush1.xpose.msra.mxu0 0.0
        %608 = vmatprep.subr.mxu0 0.0
        %609 = vmatpush1.xpose.msra.mxu0 0.0
        %610 = vmatprep.subr.mxu0 0.0
        %611 = vmatpush1.xpose.msra.mxu0 0.0
        %612 = vmatprep.subr.mxu0 0.0
        %613 = vmatpush1.xpose.msra.mxu0 0.0
        %614 = vmatprep.subr.mxu0 0.0
        %615 = vmatpush1.xpose.msra.mxu0 0.0
        %616 = vmatprep.subr.mxu0 0.0
        %617 = vmatpush1.xpose.msra.mxu0 0.0
        %618 = vmatprep.subr.mxu0 0.0
        %619 = vmatpush1.xpose.msra.mxu0 0.0
        %620 = vmatprep.subr.mxu0 0.0
        %621 = vmatpush1.xpose.msra.mxu0 0.0
        %622 = vmatprep.subr.mxu0 0.0
        %623 = vmatpush1.xpose.msra.mxu0 0.0
        %624 = vmatprep.subr.mxu0 0.0
        %625 = vmatpush1.xpose.msra.mxu0 0.0
        %626 = vmatprep.subr.mxu0 0.0
        %627 = vmatpush1.xpose.msra.mxu0 0.0
        %628 = vmatprep.subr.mxu0 0.0
        %629 = vmatpush1.xpose.msra.mxu0 0.0
        %630 = vmatprep.subr.mxu0 0.0
        %631 = vmatpush1.xpose.msra.mxu0 0.0
        %632 = vmatprep.subr.mxu0 0.0
        %633 = vmatpush1.xpose.msra.mxu0 0.0
        %634 = vmatprep.subr.mxu0 0.0
        %635 = vmatpush1.xpose.msra.mxu0 0.0
        %636 = vmatprep.subr.mxu0 0.0
        %637 = vmatpush1.xpose.msra.mxu0 0.0
        %638 = vmatprep.subr.mxu0 0.0
        %639 = vmatpush1.xpose.msra.mxu0 0.0
        %640 = vmatprep.subr.mxu0 0.0
        %641 = vmatpush1.xpose.msra.mxu0 0.0
        %642 = vmatprep.subr.mxu0 0.0
        %643 = vmatpush1.xpose.msra.mxu0 0.0
        %644 = vmatprep.subr.mxu0 0.0
        %645 = vmatpush1.xpose.msra.mxu0 0.0
        %646 = vmatprep.subr.mxu0 0.0
        %647 = vmatpush1.xpose.msra.mxu0 0.0
        %648 = vmatprep.mubr.f32.mxu0 0.0
        %649 = vmatmul.mubr.f32.gmra.mrb[0].mxu0 %v580
        %v650 = vpop.f32.mrb[0].mxu0
        %v651 = vadd.f32 0.0, %v650
        %v652 = vpop.f32.mrb[0].mxu0
        %653 = vdwg.mxu0
        %v654 = vsel %vm505, %v485, 0
        %v656 = vsel %vm505, %v492, 0
        %658 = vmatprep.subr.mxu0 0.0
        %659 = vmatpush1.xpose.msra.mxu0 %v656
        %660 = vmatprep.subr.mxu0 0.0
        %661 = vmatpush1.xpose.msra.mxu0 0.0
        %662 = vmatprep.subr.mxu0 0.0
        %663 = vmatpush1.xpose.msra.mxu0 0.0
        %664 = vmatprep.subr.mxu0 0.0
        %665 = vmatpush1.xpose.msra.mxu0 0.0
        %666 = vmatprep.subr.mxu0 0.0
        %667 = vmatpush1.xpose.msra.mxu0 0.0
        %668 = vmatprep.subr.mxu0 0.0
        %669 = vmatpush1.xpose.msra.mxu0 0.0
        %670 = vmatprep.subr.mxu0 0.0
        %671 = vmatpush1.xpose.msra.mxu0 0.0
        %672 = vmatprep.subr.mxu0 0.0
        %673 = vmatpush1.xpose.msra.mxu0 0.0
        %674 = vmatprep.subr.mxu0 0.0
        %675 = vmatpush1.xpose.msra.mxu0 0.0
        %676 = vmatprep.subr.mxu0 0.0
        %677 = vmatpush1.xpose.msra.mxu0 0.0
        %678 = vmatprep.subr.mxu0 0.0
        %679 = vmatpush1.xpose.msra.mxu0 0.0
        %680 = vmatprep.subr.mxu0 0.0
        %681 = vmatpush1.xpose.msra.mxu0 0.0
        %682 = vmatprep.subr.mxu0 0.0
        %683 = vmatpush1.xpose.msra.mxu0 0.0
        %684 = vmatprep.subr.mxu0 0.0
        %685 = vmatpush1.xpose.msra.mxu0 0.0
        %686 = vmatprep.subr.mxu0 0.0
        %687 = vmatpush1.xpose.msra.mxu0 0.0
        %688 = vmatprep.subr.mxu0 0.0
        %689 = vmatpush1.xpose.msra.mxu0 0.0
        %690 = vmatprep.subr.mxu0 0.0
        %691 = vmatpush1.xpose.msra.mxu0 0.0
        %692 = vmatprep.subr.mxu0 0.0
        %693 = vmatpush1.xpose.msra.mxu0 0.0
        %694 = vmatprep.subr.mxu0 0.0
        %695 = vmatpush1.xpose.msra.mxu0 0.0
        %696 = vmatprep.subr.mxu0 0.0
        %697 = vmatpush1.xpose.msra.mxu0 0.0
        %698 = vmatprep.subr.mxu0 0.0
        %699 = vmatpush1.xpose.msra.mxu0 0.0
        %700 = vmatprep.subr.mxu0 0.0
        %701 = vmatpush1.xpose.msra.mxu0 0.0
        %702 = vmatprep.subr.mxu0 0.0
        %703 = vmatpush1.xpose.msra.mxu0 0.0
        %704 = vmatprep.subr.mxu0 0.0
        %705 = vmatpush1.xpose.msra.mxu0 0.0
        %706 = vmatprep.subr.mxu0 0.0
        %707 = vmatpush1.xpose.msra.mxu0 0.0
        %708 = vmatprep.subr.mxu0 0.0
        %709 = vmatpush1.xpose.msra.mxu0 0.0
        %710 = vmatprep.subr.mxu0 0.0
        %711 = vmatpush1.xpose.msra.mxu0 0.0
        %712 = vmatprep.subr.mxu0 0.0
        %713 = vmatpush1.xpose.msra.mxu0 0.0
        %714 = vmatprep.subr.mxu0 0.0
        %715 = vmatpush1.xpose.msra.mxu0 0.0
        %716 = vmatprep.subr.mxu0 0.0
        %717 = vmatpush1.xpose.msra.mxu0 0.0
        %718 = vmatprep.subr.mxu0 0.0
        %719 = vmatpush1.xpose.msra.mxu0 0.0
        %720 = vmatprep.subr.mxu0 0.0
        %721 = vmatpush1.xpose.msra.mxu0 0.0
        %722 = vmatprep.mubr.f32.mxu0 0.0
        %723 = vmatmul.mubr.f32.gmra.mrb[0].mxu0 %v654
        %v724 = vpop.f32.mrb[0].mxu0
        %v725 = vadd.f32 0.0, %v724
        %v726 = vpop.f32.mrb[0].mxu0
        %727 = vdwg.mxu0
        %v728 = vsel %vm505, %v487, 0
        %v730 = vsel %vm505, %v494, 0
        %732 = vmatprep.subr.mxu0 0.0
        %733 = vmatpush1.xpose.msra.mxu0 %v730
        %734 = vmatprep.subr.mxu0 0.0
        %735 = vmatpush1.xpose.msra.mxu0 0.0
        %736 = vmatprep.subr.mxu0 0.0
        %737 = vmatpush1.xpose.msra.mxu0 0.0
        %738 = vmatprep.subr.mxu0 0.0
        %739 = vmatpush1.xpose.msra.mxu0 0.0
        %740 = vmatprep.subr.mxu0 0.0
        %741 = vmatpush1.xpose.msra.mxu0 0.0
        %742 = vmatprep.subr.mxu0 0.0
        %743 = vmatpush1.xpose.msra.mxu0 0.0
        %744 = vmatprep.subr.mxu0 0.0
        %745 = vmatpush1.xpose.msra.mxu0 0.0
        %746 = vmatprep.subr.mxu0 0.0
        %747 = vmatpush1.xpose.msra.mxu0 0.0
        %748 = vmatprep.subr.mxu0 0.0
        %749 = vmatpush1.xpose.msra.mxu0 0.0
        %750 = vmatprep.subr.mxu0 0.0
        %751 = vmatpush1.xpose.msra.mxu0 0.0
        %752 = vmatprep.subr.mxu0 0.0
        %753 = vmatpush1.xpose.msra.mxu0 0.0
        %754 = vmatprep.subr.mxu0 0.0
        %755 = vmatpush1.xpose.msra.mxu0 0.0
        %756 = vmatprep.subr.mxu0 0.0
        %757 = vmatpush1.xpose.msra.mxu0 0.0
        %758 = vmatprep.subr.mxu0 0.0
        %759 = vmatpush1.xpose.msra.mxu0 0.0
        %760 = vmatprep.subr.mxu0 0.0
        %761 = vmatpush1.xpose.msra.mxu0 0.0
        %762 = vmatprep.subr.mxu0 0.0
        %763 = vmatpush1.xpose.msra.mxu0 0.0
        %764 = vmatprep.subr.mxu0 0.0
        %765 = vmatpush1.xpose.msra.mxu0 0.0
        %766 = vmatprep.subr.mxu0 0.0
        %767 = vmatpush1.xpose.msra.mxu0 0.0
        %768 = vmatprep.subr.mxu0 0.0
        %769 = vmatpush1.xpose.msra.mxu0 0.0
        %770 = vmatprep.subr.mxu0 0.0
        %771 = vmatpush1.xpose.msra.mxu0 0.0
        %772 = vmatprep.subr.mxu0 0.0
        %773 = vmatpush1.xpose.msra.mxu0 0.0
        %774 = vmatprep.subr.mxu0 0.0
        %775 = vmatpush1.xpose.msra.mxu0 0.0
        %776 = vmatprep.subr.mxu0 0.0
        %777 = vmatpush1.xpose.msra.mxu0 0.0
        %778 = vmatprep.subr.mxu0 0.0
        %779 = vmatpush1.xpose.msra.mxu0 0.0
        %780 = vmatprep.subr.mxu0 0.0
        %781 = vmatpush1.xpose.msra.mxu0 0.0
        %782 = vmatprep.subr.mxu0 0.0
        %783 = vmatpush1.xpose.msra.mxu0 0.0
        %784 = vmatprep.subr.mxu0 0.0
        %785 = vmatpush1.xpose.msra.mxu0 0.0
        %786 = vmatprep.subr.mxu0 0.0
        %787 = vmatpush1.xpose.msra.mxu0 0.0
        %788 = vmatprep.subr.mxu0 0.0
        %789 = vmatpush1.xpose.msra.mxu0 0.0
        %790 = vmatprep.subr.mxu0 0.0
        %791 = vmatpush1.xpose.msra.mxu0 0.0
        %792 = vmatprep.subr.mxu0 0.0
        %793 = vmatpush1.xpose.msra.mxu0 0.0
        %794 = vmatprep.subr.mxu0 0.0
        %795 = vmatpush1.xpose.msra.mxu0 0.0
        %796 = vmatprep.mubr.f32.mxu0 0.0
        %797 = vmatmul.mubr.f32.gmra.mrb[0].mxu0 %v728
        %v798 = vpop.f32.mrb[0].mxu0
        %v799 = vadd.f32 0.0, %v798
        %v800 = vpop.f32.mrb[0].mxu0
        %801 = vdwg.mxu0
        %vm802 = vcmask 64512
        %v803 = vsel %vm802, %v577, -inf
        %804 = vmax.xlane.f32.xlu0 %v803
        %v805 = vpop.xlane.xlu0 %804
        %v806 = vsel %vm802, %v651, -inf
        %807 = vmax.xlane.f32.xlu0 %v806
        %v808 = vpop.xlane.xlu0 %807
        %v809 = vsel %vm802, %v725, -inf
        %810 = vmax.xlane.f32.xlu0 %v809
        %v811 = vpop.xlane.xlu0 %810
        %v812 = vsel %vm802, %v799, -inf
        %813 = vmax.xlane.f32.xlu0 %v812
        %v814 = vpop.xlane.xlu0 %813
        %v815 = vsub.f32 %v577, %v805
        %v816 = vsub.f32 %v651, %v808
        %v817 = vsub.f32 %v725, %v811
        %v818 = vsub.f32 %v799, %v814
        %v819 = vmul.f32 %v815, 1.442695
        %v820 = vpow.pop %v819
        %v821 = vmul.f32 %v816, 1.442695
        %v822 = vpow.pop %v821
        %v823 = vmul.f32 %v817, 1.442695
        %v824 = vpow.pop %v823
        %v825 = vmul.f32 %v818, 1.442695
        %v826 = vpow.pop %v825
        %v827 = vsel %vm802, %v820, 0.0
        %828 = vadd.xlane.f32.xlu0 %v827
        %v829 = vpop.xlane.xlu0 %828
        %v830 = vsel %vm802, %v822, 0.0
        %831 = vadd.xlane.f32.xlu0 %v830
        %v832 = vpop.xlane.xlu0 %831
        %v833 = vsel %vm802, %v824, 0.0
        %834 = vadd.xlane.f32.xlu0 %v833
        %v835 = vpop.xlane.xlu0 %834
        %v836 = vsel %vm802, %v826, 0.0
        %837 = vadd.xlane.f32.xlu0 %v836
        %v838 = vpop.xlane.xlu0 %837
        %v840 = vsel %vm802, %v820, 0
        %842 = vmatprep.subr.mxu0 0.0
        %843 = vmatpush1.msra.mxu0 %v478
        %844 = vmatprep.subr.mxu0 0.0
        %845 = vmatpush1.msra.mxu0 0.0
        %846 = vmatprep.subr.mxu0 0.0
        %847 = vmatpush1.msra.mxu0 0.0
        %848 = vmatprep.subr.mxu0 0.0
        %849 = vmatpush1.msra.mxu0 0.0
        %850 = vmatprep.subr.mxu0 0.0
        %851 = vmatpush1.msra.mxu0 0.0
        %852 = vmatprep.subr.mxu0 0.0
        %853 = vmatpush1.msra.mxu0 0.0
        %854 = vmatprep.subr.mxu0 0.0
        %855 = vmatpush1.msra.mxu0 0.0
        %856 = vmatprep.subr.mxu0 0.0
        %857 = vmatpush1.msra.mxu0 0.0
        %858 = vmatprep.subr.mxu0 0.0
        %859 = vmatpush1.msra.mxu0 0.0
        %860 = vmatprep.subr.mxu0 0.0
        %861 = vmatpush1.msra.mxu0 0.0
        %862 = vmatprep.subr.mxu0 0.0
        %863 = vmatpush1.msra.mxu0 0.0
        %864 = vmatprep.subr.mxu0 0.0
        %865 = vmatpush1.msra.mxu0 0.0
        %866 = vmatprep.subr.mxu0 0.0
        %867 = vmatpush1.msra.mxu0 0.0
        %868 = vmatprep.subr.mxu0 0.0
        %869 = vmatpush1.msra.mxu0 0.0
        %870 = vmatprep.subr.mxu0 0.0
        %871 = vmatpush1.msra.mxu0 0.0
        %872 = vmatprep.subr.mxu0 0.0
        %873 = vmatpush1.msra.mxu0 0.0
        %874 = vmatprep.subr.mxu0 0.0
        %875 = vmatpush1.msra.mxu0 0.0
        %876 = vmatprep.subr.mxu0 0.0
        %877 = vmatpush1.msra.mxu0 0.0
        %878 = vmatprep.subr.mxu0 0.0
        %879 = vmatpush1.msra.mxu0 0.0
        %880 = vmatprep.subr.mxu0 0.0
        %881 = vmatpush1.msra.mxu0 0.0
        %882 = vmatprep.subr.mxu0 0.0
        %883 = vmatpush1.msra.mxu0 0.0
        %884 = vmatprep.subr.mxu0 0.0
        %885 = vmatpush1.msra.mxu0 0.0
        %886 = vmatprep.subr.mxu0 0.0
        %887 = vmatpush1.msra.mxu0 0.0
        %888 = vmatprep.subr.mxu0 0.0
        %889 = vmatpush1.msra.mxu0 0.0
        %890 = vmatprep.subr.mxu0 0.0
        %891 = vmatpush1.msra.mxu0 0.0
        %892 = vmatprep.subr.mxu0 0.0
        %893 = vmatpush1.msra.mxu0 0.0
        %894 = vmatprep.subr.mxu0 0.0
        %895 = vmatpush1.msra.mxu0 0.0
        %896 = vmatprep.subr.mxu0 0.0
        %897 = vmatpush1.msra.mxu0 0.0
        %898 = vmatprep.subr.mxu0 0.0
        %899 = vmatpush1.msra.mxu0 0.0
        %900 = vmatprep.subr.mxu0 0.0
        %901 = vmatpush1.msra.mxu0 0.0
        %902 = vmatprep.subr.mxu0 0.0
        %903 = vmatpush1.msra.mxu0 0.0
        %904 = vmatprep.subr.mxu0 0.0
        %905 = vmatpush1.msra.mxu0 0.0
        %906 = vmatprep.mubr.f32.mxu0 0.0
        %907 = vmatmul.mubr.f32.gmra.mrb[0].mxu0 %v840
        %v908 = vpop.f32.mrb[0].mxu0
        %v909 = vadd.f32 0.0, %v908
        %v910 = vpop.f32.mrb[0].mxu0
        %911 = vdwg.mxu0
        %v913 = vsel %vm802, %v822, 0
        %915 = vmatprep.subr.mxu0 0.0
        %916 = vmatpush1.msra.mxu0 %v497
        %917 = vmatprep.subr.mxu0 0.0
        %918 = vmatpush1.msra.mxu0 0.0
        %919 = vmatprep.subr.mxu0 0.0
        %920 = vmatpush1.msra.mxu0 0.0
        %921 = vmatprep.subr.mxu0 0.0
        %922 = vmatpush1.msra.mxu0 0.0
        %923 = vmatprep.subr.mxu0 0.0
        %924 = vmatpush1.msra.mxu0 0.0
        %925 = vmatprep.subr.mxu0 0.0
        %926 = vmatpush1.msra.mxu0 0.0
        %927 = vmatprep.subr.mxu0 0.0
        %928 = vmatpush1.msra.mxu0 0.0
        %929 = vmatprep.subr.mxu0 0.0
        %930 = vmatpush1.msra.mxu0 0.0
        %931 = vmatprep.subr.mxu0 0.0
        %932 = vmatpush1.msra.mxu0 0.0
        %933 = vmatprep.subr.mxu0 0.0
        %934 = vmatpush1.msra.mxu0 0.0
        %935 = vmatprep.subr.mxu0 0.0
        %936 = vmatpush1.msra.mxu0 0.0
        %937 = vmatprep.subr.mxu0 0.0
        %938 = vmatpush1.msra.mxu0 0.0
        %939 = vmatprep.subr.mxu0 0.0
        %940 = vmatpush1.msra.mxu0 0.0
        %941 = vmatprep.subr.mxu0 0.0
        %942 = vmatpush1.msra.mxu0 0.0
        %943 = vmatprep.subr.mxu0 0.0
        %944 = vmatpush1.msra.mxu0 0.0
        %945 = vmatprep.subr.mxu0 0.0
        %946 = vmatpush1.msra.mxu0 0.0
        %947 = vmatprep.subr.mxu0 0.0
        %948 = vmatpush1.msra.mxu0 0.0
        %949 = vmatprep.subr.mxu0 0.0
        %950 = vmatpush1.msra.mxu0 0.0
        %951 = vmatprep.subr.mxu0 0.0
        %952 = vmatpush1.msra.mxu0 0.0
        %953 = vmatprep.subr.mxu0 0.0
        %954 = vmatpush1.msra.mxu0 0.0
        %955 = vmatprep.subr.mxu0 0.0
        %956 = vmatpush1.msra.mxu0 0.0
        %957 = vmatprep.subr.mxu0 0.0
        %958 = vmatpush1.msra.mxu0 0.0
        %959 = vmatprep.subr.mxu0 0.0
        %960 = vmatpush1.msra.mxu0 0.0
        %961 = vmatprep.subr.mxu0 0.0
        %962 = vmatpush1.msra.mxu0 0.0
        %963 = vmatprep.subr.mxu0 0.0
        %964 = vmatpush1.msra.mxu0 0.0
        %965 = vmatprep.subr.mxu0 0.0
        %966 = vmatpush1.msra.mxu0 0.0
        %967 = vmatprep.subr.mxu0 0.0
        %968 = vmatpush1.msra.mxu0 0.0
        %969 = vmatprep.subr.mxu0 0.0
        %970 = vmatpush1.msra.mxu0 0.0
        %971 = vmatprep.subr.mxu0 0.0
        %972 = vmatpush1.msra.mxu0 0.0
        %973 = vmatprep.subr.mxu0 0.0
        %974 = vmatpush1.msra.mxu0 0.0
        %975 = vmatprep.subr.mxu0 0.0
        %976 = vmatpush1.msra.mxu0 0.0
        %977 = vmatprep.subr.mxu0 0.0
        %978 = vmatpush1.msra.mxu0 0.0
        %979 = vmatprep.mubr.f32.mxu0 0.0
        %980 = vmatmul.mubr.f32.gmra.mrb[0].mxu0 %v913
        %v981 = vpop.f32.mrb[0].mxu0
        %v982 = vadd.f32 0.0, %v981
        %v983 = vpop.f32.mrb[0].mxu0
        %984 = vdwg.mxu0
        %v986 = vsel %vm802, %v824, 0
        %988 = vmatprep.subr.mxu0 0.0
        %989 = vmatpush1.msra.mxu0 %v500
        %990 = vmatprep.subr.mxu0 0.0
        %991 = vmatpush1.msra.mxu0 0.0
        %992 = vmatprep.subr.mxu0 0.0
        %993 = vmatpush1.msra.mxu0 0.0
        %994 = vmatprep.subr.mxu0 0.0
        %995 = vmatpush1.msra.mxu0 0.0
        %996 = vmatprep.subr.mxu0 0.0
        %997 = vmatpush1.msra.mxu0 0.0
        %998 = vmatprep.subr.mxu0 0.0
        %999 = vmatpush1.msra.mxu0 0.0
        %1000 = vmatprep.subr.mxu0 0.0
        %1001 = vmatpush1.msra.mxu0 0.0
        %1002 = vmatprep.subr.mxu0 0.0
        %1003 = vmatpush1.msra.mxu0 0.0
        %1004 = vmatprep.subr.mxu0 0.0
        %1005 = vmatpush1.msra.mxu0 0.0
        %1006 = vmatprep.subr.mxu0 0.0
        %1007 = vmatpush1.msra.mxu0 0.0
        %1008 = vmatprep.subr.mxu0 0.0
        %1009 = vmatpush1.msra.mxu0 0.0
        %1010 = vmatprep.subr.mxu0 0.0
        %1011 = vmatpush1.msra.mxu0 0.0
        %1012 = vmatprep.subr.mxu0 0.0
        %1013 = vmatpush1.msra.mxu0 0.0
        %1014 = vmatprep.subr.mxu0 0.0
        %1015 = vmatpush1.msra.mxu0 0.0
        %1016 = vmatprep.subr.mxu0 0.0
        %1017 = vmatpush1.msra.mxu0 0.0
        %1018 = vmatprep.subr.mxu0 0.0
        %1019 = vmatpush1.msra.mxu0 0.0
        %1020 = vmatprep.subr.mxu0 0.0
        %1021 = vmatpush1.msra.mxu0 0.0
        %1022 = vmatprep.subr.mxu0 0.0
        %1023 = vmatpush1.msra.mxu0 0.0
        %1024 = vmatprep.subr.mxu0 0.0
        %1025 = vmatpush1.msra.mxu0 0.0
        %1026 = vmatprep.subr.mxu0 0.0
        %1027 = vmatpush1.msra.mxu0 0.0
        %1028 = vmatprep.subr.mxu0 0.0
        %1029 = vmatpush1.msra.mxu0 0.0
        %1030 = vmatprep.subr.mxu0 0.0
        %1031 = vmatpush1.msra.mxu0 0.0
        %1032 = vmatprep.subr.mxu0 0.0
        %1033 = vmatpush1.msra.mxu0 0.0
        %1034 = vmatprep.subr.mxu0 0.0
        %1035 = vmatpush1.msra.mxu0 0.0
        %1036 = vmatprep.subr.mxu0 0.0
        %1037 = vmatpush1.msra.mxu0 0.0
        %1038 = vmatprep.subr.mxu0 0.0
        %1039 = vmatpush1.msra.mxu0 0.0
        %1040 = vmatprep.subr.mxu0 0.0
        %1041 = vmatpush1.msra.mxu0 0.0
        %1042 = vmatprep.subr.mxu0 0.0
        %1043 = vmatpush1.msra.mxu0 0.0
        %1044 = vmatprep.subr.mxu0 0.0
        %1045 = vmatpush1.msra.mxu0 0.0
        %1046 = vmatprep.subr.mxu0 0.0
        %1047 = vmatpush1.msra.mxu0 0.0
        %1048 = vmatprep.subr.mxu0 0.0
        %1049 = vmatpush1.msra.mxu0 0.0
        %1050 = vmatprep.subr.mxu0 0.0
        %1051 = vmatpush1.msra.mxu0 0.0
        %1052 = vmatprep.mubr.f32.mxu0 0.0
        %1053 = vmatmul.mubr.f32.gmra.mrb[0].mxu0 %v986
        %v1054 = vpop.f32.mrb[0].mxu0
        %v1055 = vadd.f32 0.0, %v1054
        %v1056 = vpop.f32.mrb[0].mxu0
        %1057 = vdwg.mxu0
        %v1059 = vsel %vm802, %v826, 0
        %1061 = vmatprep.subr.mxu0 0.0
        %1062 = vmatpush1.msra.mxu0 %v503
        %1063 = vmatprep.subr.mxu0 0.0
        %1064 = vmatpush1.msra.mxu0 0.0
        %1065 = vmatprep.subr.mxu0 0.0
        %1066 = vmatpush1.msra.mxu0 0.0
        %1067 = vmatprep.subr.mxu0 0.0
        %1068 = vmatpush1.msra.mxu0 0.0
        %1069 = vmatprep.subr.mxu0 0.0
        %1070 = vmatpush1.msra.mxu0 0.0
        %1071 = vmatprep.subr.mxu0 0.0
        %1072 = vmatpush1.msra.mxu0 0.0
        %1073 = vmatprep.subr.mxu0 0.0
        %1074 = vmatpush1.msra.mxu0 0.0
        %1075 = vmatprep.subr.mxu0 0.0
        %1076 = vmatpush1.msra.mxu0 0.0
        %1077 = vmatprep.subr.mxu0 0.0
        %1078 = vmatpush1.msra.mxu0 0.0
        %1079 = vmatprep.subr.mxu0 0.0
        %1080 = vmatpush1.msra.mxu0 0.0
        %1081 = vmatprep.subr.mxu0 0.0
        %1082 = vmatpush1.msra.mxu0 0.0
        %1083 = vmatprep.subr.mxu0 0.0
        %1084 = vmatpush1.msra.mxu0 0.0
        %1085 = vmatprep.subr.mxu0 0.0
        %1086 = vmatpush1.msra.mxu0 0.0
        %1087 = vmatprep.subr.mxu0 0.0
        %1088 = vmatpush1.msra.mxu0 0.0
        %1089 = vmatprep.subr.mxu0 0.0
        %1090 = vmatpush1.msra.mxu0 0.0
        %1091 = vmatprep.subr.mxu0 0.0
        %1092 = vmatpush1.msra.mxu0 0.0
        %1093 = vmatprep.subr.mxu0 0.0
        %1094 = vmatpush1.msra.mxu0 0.0
        %1095 = vmatprep.subr.mxu0 0.0
        %1096 = vmatpush1.msra.mxu0 0.0
        %1097 = vmatprep.subr.mxu0 0.0
        %1098 = vmatpush1.msra.mxu0 0.0
        %1099 = vmatprep.subr.mxu0 0.0
        %1100 = vmatpush1.msra.mxu0 0.0
        %1101 = vmatprep.subr.mxu0 0.0
        %1102 = vmatpush1.msra.mxu0 0.0
        %1103 = vmatprep.subr.mxu0 0.0
        %1104 = vmatpush1.msra.mxu0 0.0
        %1105 = vmatprep.subr.mxu0 0.0
        %1106 = vmatpush1.msra.mxu0 0.0
        %1107 = vmatprep.subr.mxu0 0.0
        %1108 = vmatpush1.msra.mxu0 0.0
        %1109 = vmatprep.subr.mxu0 0.0
        %1110 = vmatpush1.msra.mxu0 0.0
        %1111 = vmatprep.subr.mxu0 0.0
        %1112 = vmatpush1.msra.mxu0 0.0
        %1113 = vmatprep.subr.mxu0 0.0
        %1114 = vmatpush1.msra.mxu0 0.0
        %1115 = vmatprep.subr.mxu0 0.0
        %1116 = vmatpush1.msra.mxu0 0.0
        %1117 = vmatprep.subr.mxu0 0.0
        %1118 = vmatpush1.msra.mxu0 0.0
        %1119 = vmatprep.subr.mxu0 0.0
        %1120 = vmatpush1.msra.mxu0 0.0
        %1121 = vmatprep.subr.mxu0 0.0
        %1122 = vmatpush1.msra.mxu0 0.0
        %1123 = vmatprep.subr.mxu0 0.0
        %1124 = vmatpush1.msra.mxu0 0.0
        %1125 = vmatprep.mubr.f32.mxu0 0.0
        %1126 = vmatmul.mubr.f32.gmra.mrb[0].mxu0 %v1059
        %v1127 = vpop.f32.mrb[0].mxu0
        %v1128 = vadd.f32 0.0, %v1127
        %v1129 = vpop.f32.mrb[0].mxu0
        %1130 = vdwg.mxu0
        %v1131 = vrcp.pop %v829
        %v1132 = vmul.f32 %v909, %v1131
        %v1133 = vrcp.pop %v832
        %v1134 = vmul.f32 %v982, %v1133
        %v1135 = vrcp.pop %v835
        %v1136 = vmul.f32 %v1055, %v1135
        %v1137 = vrcp.pop %v838
        %v1138 = vmul.f32 %v1128, %v1137
        %1140 = vrot.lane.b32.xlu0 %v1134, 32
        %v1141 = vpop.permute.xlu0 %1140
        %1144 = vrot.lane.b32.xlu0 %v1136, 64
        %v1145 = vpop.permute.xlu0 %1144
        %1148 = vrot.lane.b32.xlu0 %v1138, 96
        %v1149 = vpop.permute.xlu0 %1148
        %v1151 = vsel %vm505, %v1132, %v1141
        %v1152 = vsel %vm336, %v1151, %v1145
        %vm1153 = vcmask 785408
        %v1154 = vsel %vm1153, %v1152, %v1149
        %v1155 = vld [vmem:[#allocation8] sm:$0xff]
        %v1156 = vld [vmem:[#allocation8 + $0x8] sm:$0xff]
        %v1157 = vld [vmem:[#allocation8 + $0x10] sm:$0xff]
        %v1158 = vld [vmem:[#allocation8 + $0x18] sm:$0xff]
        %v1159 = vld [vmem:[#allocation8 + $0x20] sm:$0xff]
        %v1160 = vld [vmem:[#allocation8 + $0x28] sm:$0xff]
        %v1161 = vld [vmem:[#allocation8 + $0x30] sm:$0xff]
        %v1162 = vld [vmem:[#allocation8 + $0x38] sm:$0xff]
        %v1163 = vld [vmem:[#allocation8 + $0x40] sm:$0xff]
        %v1164 = vld [vmem:[#allocation8 + $0x48] sm:$0xff]
        %v1165 = vld [vmem:[#allocation8 + $0x50] sm:$0xff]
        %v1166 = vld [vmem:[#allocation8 + $0x58] sm:$0xff]
        %v1167 = vld [vmem:[#allocation8 + $0x60] sm:$0xff]
        %v1168 = vld [vmem:[#allocation8 + $0x68] sm:$0xff]
        %v1169 = vld [vmem:[#allocation8 + $0x70] sm:$0xff]
        %v1170 = vld [vmem:[#allocation8 + $0x78] sm:$0xff]
        %v1171 = vld [vmem:[#allocation10] sm:$0x1]
        %v1173 = vlaneseq
        %v1174 = vshrl.u32 %v1173, 7
        %v1175 = vsub.s32 0, %v1174
        %v1176 = vrot.slane %v1171, %v1175
        %1178 = vmatprep.subr.mxu0 0.0
        %1179 = vmatpush1.msra.mxu0 %v1155
        %1180 = vmatprep.subr.mxu0 0.0
        %1181 = vmatpush1.msra.mxu0 %v1156
        %1182 = vmatprep.subr.mxu0 0.0
        %1183 = vmatpush1.msra.mxu0 %v1157
        %1184 = vmatprep.subr.mxu0 0.0
        %1185 = vmatpush1.msra.mxu0 %v1158
        %1186 = vmatprep.subr.mxu0 0.0
        %1187 = vmatpush1.msra.mxu0 %v1159
        %1188 = vmatprep.subr.mxu0 0.0
        %1189 = vmatpush1.msra.mxu0 %v1160
        %1190 = vmatprep.subr.mxu0 0.0
        %1191 = vmatpush1.msra.mxu0 %v1161
        %1192 = vmatprep.subr.mxu0 0.0
        %1193 = vmatpush1.msra.mxu0 %v1162
        %1194 = vmatprep.subr.mxu0 0.0
        %1195 = vmatpush1.msra.mxu0 %v1163
        %1196 = vmatprep.subr.mxu0 0.0
        %1197 = vmatpush1.msra.mxu0 %v1164
        %1198 = vmatprep.subr.mxu0 0.0
        %1199 = vmatpush1.msra.mxu0 %v1165
        %1200 = vmatprep.subr.mxu0 0.0
        %1201 = vmatpush1.msra.mxu0 %v1166
        %1202 = vmatprep.subr.mxu0 0.0
        %1203 = vmatpush1.msra.mxu0 %v1167
        %1204 = vmatprep.subr.mxu0 0.0
        %1205 = vmatpush1.msra.mxu0 %v1168
        %1206 = vmatprep.subr.mxu0 0.0
        %1207 = vmatpush1.msra.mxu0 %v1169
        %1208 = vmatprep.subr.mxu0 0.0
        %1209 = vmatpush1.msra.mxu0 %v1170
        %1210 = vmatprep.subr.mxu0 0.0
        %1211 = vmatpush1.msra.mxu0 0.0
        %1212 = vmatprep.subr.mxu0 0.0
        %1213 = vmatpush1.msra.mxu0 0.0
        %1214 = vmatprep.subr.mxu0 0.0
        %1215 = vmatpush1.msra.mxu0 0.0
        %1216 = vmatprep.subr.mxu0 0.0
        %1217 = vmatpush1.msra.mxu0 0.0
        %1218 = vmatprep.subr.mxu0 0.0
        %1219 = vmatpush1.msra.mxu0 0.0
        %1220 = vmatprep.subr.mxu0 0.0
        %1221 = vmatpush1.msra.mxu0 0.0
        %1222 = vmatprep.subr.mxu0 0.0
        %1223 = vmatpush1.msra.mxu0 0.0
        %1224 = vmatprep.subr.mxu0 0.0
        %1225 = vmatpush1.msra.mxu0 0.0
        %1226 = vmatprep.subr.mxu0 0.0
        %1227 = vmatpush1.msra.mxu0 0.0
        %1228 = vmatprep.subr.mxu0 0.0
        %1229 = vmatpush1.msra.mxu0 0.0
        %1230 = vmatprep.subr.mxu0 0.0
        %1231 = vmatpush1.msra.mxu0 0.0
        %1232 = vmatprep.subr.mxu0 0.0
        %1233 = vmatpush1.msra.mxu0 0.0
        %1234 = vmatprep.subr.mxu0 0.0
        %1235 = vmatpush1.msra.mxu0 0.0
        %1236 = vmatprep.subr.mxu0 0.0
        %1237 = vmatpush1.msra.mxu0 0.0
        %1238 = vmatprep.subr.mxu0 0.0
        %1239 = vmatpush1.msra.mxu0 0.0
        %1240 = vmatprep.subr.mxu0 0.0
        %1241 = vmatpush1.msra.mxu0 0.0
        %1242 = vmatprep.mubr.f32.mxu0 0.0
        %1243 = vmatmul.mubr.f32.gmra.mrb[0].mxu0 %v1154
        %v1244 = vpop.f32.mrb[0].mxu0
        %v1245 = vadd.f32 %v1176, %v1244
        %v1246 = vpop.f32.mrb[0].mxu0
        %1247 = vdwg.mxu0
        %1248 = vst [vmem:[%s293] sm:$0xff] %v1245
        %s1249 = sand.u32 %s142, 1
        %s1250 = scalar_lea.sflag [#allocation4], %s1249
        %s1251 = sand.u32 %s142, 1
        %s1252 = smul.addr %s1251, 8
        %s1253 = scalar_lea.vmem [#allocation11], %s1252
        // Predicated region
        $region61: #{tpu_custom_call.1} parent=39 // pred_check
          %p1254 = pneg %p152
        $region62: #{tpu_custom_call.1} parent=39 // pred_check_branch
          %1256 = sbr.rel (%p1254) target = $region64
        $region63: #{tpu_custom_call.1} parent=39 // pred_region
          %s1258 = ssub.s32 128, 128
          %1259 = vsyncadd %s1250, %s1258
          %s1260 = smul.addr %s24, 128
          %s1261 = scalar_lea.hbm %s5, %s1260
          %s1263 = sshll.u32 %s1253, 4
          %s1264 = int_to_ptr.vmem [resolvable:$true] %s1263
          %1266 = dma.vmem_to_hbm [thread:$0]  %s1264, 128, %s1261, %s1250
        $region64: #{tpu_custom_call.1} parent=39 // pred_fallthru
          _
      $region40: #{tpu_custom_call.1} parent=5 // pred_fallthru
        _
      %p1267 = scmp.le.s32.totalorder 2, %s19
      // Predicated region
      $region65: #{tpu_custom_call.1} parent=5 // pred_check
        %p1268 = pneg %p1267
      $region66: #{tpu_custom_call.1} parent=5 // pred_check_branch
        %1270 = sbr.rel (%p1268) target = $region68
      $region67: #{tpu_custom_call.1} parent=5 // pred_region
        %s1271 = ssub.s32 %s19, 2
        // Predicated region
        $region69: #{tpu_custom_call.1} parent=67 // pred_check
          %p1272 = pneg %p158
        $region70: #{tpu_custom_call.1} parent=67 // pred_check_branch
          %1274 = sbr.rel (%p1272) target = $region72
        $region71: #{tpu_custom_call.1} parent=67 // pred_region
          %s1275 = sand.u32 %s143, 1
          %s1276 = scalar_lea.sflag [#allocation4], %s1275
          %s1277 = sand.u32 %s143, 1
          %s1278 = smul.addr %s1277, 8
          %s1279 = scalar_lea.vmem [#allocation11], %s1278
          %1280 = dma.done %s1276, 128
        $region72: #{tpu_custom_call.1} parent=67 // pred_fallthru
          _
      $region68: #{tpu_custom_call.1} parent=5 // pred_fallthru
        _
    $region6: #{tpu_custom_call.1} parent=1 // loop_footer
      %s23 = sadd.s32 1, %s19
    $region7: #{tpu_custom_call.1} parent=1 // loop_footer_branch
      %18 = sbr.rel target = $region3
    $region8: #{tpu_custom_call.1} parent=1 // loop_exit
      _
    %1281 = vsyncpa [#allocation3], 1
    %s1282 = scalar_lea.sflag [#allocation3], 1
    %1283 = vsyncpa %s1282, 1
    %1284 = vsyncpa [#allocation6], 1
    %1285 = vsyncpa [#allocation9], 1
    %1286 = vsyncpa [#allocation4], 1
    %s1287 = scalar_lea.sflag [#allocation4], 1
    %1288 = vsyncpa %s1287, 1

</llo_original>
